<compile_context>
chip_gen: v6e
topology: v6e:2x2x1
jax: 0.10.0
libtpu: 0.0.40
codegen_flags: <defaults>
</compile_context>

<pallas_src>
import functools

import jax
import jax.numpy as jnp
from jax.experimental import pallas as pl
from jax.experimental.pallas import tpu as pltpu

LN_EPS = 1e-5  # torch.nn.LayerNorm default eps


def _round_up(x, m):
    return (x + m - 1) // m * m


def _vmem_budgets():
    """(tile_budget_bytes, vmem_limit_cap_bytes) for the local TPU generation."""
    cap = 64 * 1024 * 1024                      # conservative default (v7x: 64 MiB / TC)
    try:
        info = pltpu.get_tpu_info()
        cap = int(getattr(info, "vmem_capacity_bytes", cap))
    except Exception:
        pass
    if cap >= 96 * 1024 * 1024:                 # v5e / v6e: 128 MiB VMEM per core
        return 28 * 1024 * 1024, 100 * 1024 * 1024
    return 12 * 1024 * 1024, 48 * 1024 * 1024   # v7x: 64 MiB per TensorCore


def _choose_batch_tile(B, HWp, Cp, itemsize, tile_budget_bytes):
    """Batch tile whose double-buffered image block + f32 pooling temp fit the budget."""
    per_sample = Cp * HWp * (2 * itemsize + 4)  # 2x input buffers + f32 reduce temp
    tb = max(1, tile_budget_bytes // max(per_sample, 1))
    tb = min(int(tb), 128, _round_up(B, 8))
    if B >= 16:                                   # keep >= 2 grid steps so both
        tb = min(tb, _round_up((B + 1) // 2, 8))  # v7x TensorCores get work
    return max(8, (tb // 8) * 8)


def _estimate_vmem_bytes(tb, HWp, Cp, Dtp, hp, itemsize, cap):
    stream = 2 * (tb * Cp * HWp * itemsize        # image block (double-buffered)
                  + tb * Dtp * 4                  # text block (f32)
                  + 2 * tb * hp * 4)              # two output blocks
    f32_tmp = tb * Cp * HWp * 4                   # x.astype(f32) pooling temp
    weights = 2 * ((Cp * hp + Dtp * hp) * itemsize + 8 * hp * 4)  # counted 2x
    est = int(1.3 * (stream + f32_tmp + weights)) + (2 << 20)
    return min(max(est, 32 * 1024 * 1024), cap)


def _tanh_layernorm(y, gamma, beta, hidden, hp):
    """tanh -> LayerNorm over the first `hidden` of `hp` lanes of (tb, hp) f32."""
    y = jnp.tanh(y)
    if hidden == hp:
        mu = jnp.mean(y, axis=-1, keepdims=True)
        d = y - mu
        var = jnp.mean(d * d, axis=-1, keepdims=True)
    else:
        lane = jax.lax.broadcasted_iota(jnp.int32, y.shape, 1)
        mask = (lane < hidden).astype(y.dtype)
        inv_n = 1.0 / hidden
        y = y * mask
        mu = jnp.sum(y, axis=-1, keepdims=True) * inv_n
        d = (y - mu) * mask
        var = jnp.sum(d * d, axis=-1, keepdims=True) * inv_n
    return d * jax.lax.rsqrt(var + LN_EPS) * gamma + beta


def _ranker_kernel(hidden, hp,
                   ximg_ref, xtxt_ref, iw_ref, tw_ref, vec_ref,
                   img_o_ref, txt_o_ref):
    vecs = vec_ref[...]                               # (8, hp) f32 packed params

    # ---- image branch: AdaptiveAvgPool2d(1) + Flatten + Linear + Tanh + LN
    x = ximg_ref[...]                                 # (tb, C, HW), HW on lanes
    pooled = jnp.sum(x.astype(jnp.float32), axis=-1)  # (tb, C); 1/HW folded into iw
    yi = jnp.dot(pooled.astype(iw_ref.dtype), iw_ref[...],
                 preferred_element_type=jnp.float32) + vecs[0:1]
    img_o_ref[...] = _tanh_layernorm(
        yi, vecs[1:2], vecs[2:3], hidden, hp).astype(img_o_ref.dtype)

    # ---- text branch: cat(tfidf(comment), tfidf(title)) @ W + b -> Tanh -> LN
    yt = jnp.dot(xtxt_ref[...].astype(tw_ref.dtype), tw_ref[...],
                 preferred_element_type=jnp.float32) + vecs[3:4]
    txt_o_ref[...] = _tanh_layernorm(
        yt, vecs[4:5], vecs[5:6], hidden, hp).astype(txt_o_ref.dtype)


def ranker_forward(images_nchw, x_comment, x_title, params, *,
                   compute_dtype=jnp.bfloat16, out_dtype=jnp.float32,
                   batch_tile=None):
    """Mirrors Ranker.forward -> (image_embedding, text_embedding).

    `images_nchw` is the frozen trunk's (B, C_feat, H, W) feature map (any
    float dtype; bf16 recommended — no wrapper transpose or cast is done).
    """
    B, C, H, W = images_nchw.shape
    HW = H * W
    hidden = params["img_w"].shape[1]
    hp = _round_up(hidden, 128)              # lane-dense output width

    # Free reshape (NCHW is contiguous); pooling over HW happens in-kernel.
    x_img = images_nchw.reshape(B, C, HW)
    x_txt = jnp.concatenate([x_comment, x_title], axis=1)
    Dtot = x_txt.shape[1]

    itemsize = x_img.dtype.itemsize
    Cp, HWp, Dtp = _round_up(C, 8), _round_up(HW, 128), _round_up(Dtot, 128)
    tile_budget, vmem_cap = _vmem_budgets()
    tb = batch_tile or _choose_batch_tile(B, HWp, Cp, itemsize, tile_budget)
    Bp = _round_up(B, tb)
    if Bp != B:                              # exact blocks; padded rows are discarded
        x_img = jnp.pad(x_img, ((0, Bp - B), (0, 0), (0, 0)))
        x_txt = jnp.pad(x_txt, ((0, Bp - B), (0, 0)))

    def pad_h(p):
        return jnp.pad(p, ((0, 0), (0, hp - hidden))) if hp != hidden else p

    # 1/HW pooling scale folded into the image projector; weights in bf16.
    iw = pad_h(params["img_w"] * (1.0 / HW)).astype(compute_dtype)
    tw = pad_h(params["txt_w"]).astype(compute_dtype)
    # Six bias/gamma/beta vectors packed into one (8, hp) f32 block.
    vecs = jnp.zeros((8, hp), jnp.float32).at[:6, :hidden].set(
        jnp.stack([params["img_b"], params["img_g"], params["img_beta"],
                   params["txt_b"], params["txt_g"], params["txt_beta"]]))

    vmem_bytes = _estimate_vmem_bytes(tb, HWp, Cp, Dtp, hp, itemsize, vmem_cap)

    def run(single_buffer_weights):
        w_kwargs = ({"pipeline_mode": pl.Buffered(1)}
                    if single_buffer_weights else {})
        const2 = lambda i: (0, 0)
        return pl.pallas_call(
            functools.partial(_ranker_kernel, hidden, hp),
            out_shape=(jax.ShapeDtypeStruct((Bp, hp), out_dtype),
                       jax.ShapeDtypeStruct((Bp, hp), out_dtype)),
            grid=(Bp // tb,),
            in_specs=[
                pl.BlockSpec((tb, C, HW), lambda i: (i, 0, 0)),   # image features
                pl.BlockSpec((tb, Dtot), lambda i: (i, 0)),       # tf-idf text
                pl.BlockSpec((C, hp), const2, **w_kwargs),        # img proj W (resident)
                pl.BlockSpec((Dtot, hp), const2, **w_kwargs),     # txt proj W (resident)
                pl.BlockSpec((8, hp), const2, **w_kwargs),        # packed bias/gamma/beta
            ],
            out_specs=(pl.BlockSpec((tb, hp), lambda i: (i, 0)),
                       pl.BlockSpec((tb, hp), lambda i: (i, 0))),
            compiler_params=pltpu.CompilerParams(
                dimension_semantics=("parallel",),   # shard batch over v7x's 2 TCs
                vmem_limit_bytes=vmem_bytes),
        )(x_img, x_txt, iw, tw, vecs)

    try:
        img_p, txt_p = run(True)      # resident weight blocks single-buffered
    except Exception:
        img_p, txt_p = run(False)     # fallback: default double-buffering

    return img_p[:B, :hidden], txt_p[:B, :hidden]


def init_params(key, feat_channels, comment_dim, title_dim, hidden_dim):
    k1, k2, k3, k4 = jax.random.split(key, 4)
    d_txt = comment_dim + title_dim
    img_lim = 1.0 / (feat_channels ** 0.5)
    txt_lim = 1.0 / (d_txt ** 0.5)
    return {
        "img_w": jax.random.uniform(k1, (feat_channels, hidden_dim), jnp.float32,
                                    -img_lim, img_lim),
        "img_b": jax.random.uniform(k2, (hidden_dim,), jnp.float32, -img_lim, img_lim),
        "img_g": jnp.ones((hidden_dim,), jnp.float32),
        "img_beta": jnp.zeros((hidden_dim,), jnp.float32),
        "txt_w": jax.random.uniform(k3, (d_txt, hidden_dim), jnp.float32,
                                    -txt_lim, txt_lim),
        "txt_b": jax.random.uniform(k4, (hidden_dim,), jnp.float32, -txt_lim, txt_lim),
        "txt_g": jnp.ones((hidden_dim,), jnp.float32),
        "txt_beta": jnp.zeros((hidden_dim,), jnp.float32),
    }


if __name__ == "__main__":
    B = 2
    FEAT_C = 64        # stand-in for resnet152 fc.in_features (=2048) at small scale
    H = W = 16
    COMMENT_DIM = 24   # TfidfEncoder(max_features=24) for comments
    TITLE_DIM = 16     # TfidfEncoder(max_features=16) for titles
    HIDDEN = 32

    key = jax.random.PRNGKey(0)
    kp, ki, kc, kt = jax.random.split(key, 4)

    params = init_params(kp, FEAT_C, COMMENT_DIM, TITLE_DIM, HIDDEN)

    # Frozen-trunk feature map, fed in bf16 (in production the backbone emits bf16).
    images = jax.random.normal(ki, (B, FEAT_C, H, W), jnp.float32)       # NCHW
    feats_bf16 = images.astype(jnp.bfloat16)
    x_comment = jax.random.normal(kc, (B, COMMENT_DIM), jnp.float32)     # tf-idf(comment)
    x_title = jax.random.normal(kt, (B, TITLE_DIM), jnp.float32)         # tf-idf(title)

    img_emb, txt_emb = ranker_forward(feats_bf16, x_comment, x_title, params)
    jax.block_until_ready((img_emb, txt_emb))

    # Reference in plain JAX: same math, same bf16 input/weight quantisation.
    HWn = H * W
    pooled = jnp.sum(feats_bf16.astype(jnp.float32).reshape(B, FEAT_C, HWn), -1)
    iw_ref = (params["img_w"] * (1.0 / HWn)).astype(jnp.bfloat16).astype(jnp.float32)
    yi = pooled.astype(jnp.bfloat16).astype(jnp.float32) @ iw_ref + params["img_b"]
    yi = jnp.tanh(yi)
    yi = (yi - yi.mean(-1, keepdims=True)) * jax.lax.rsqrt(
        yi.var(-1, keepdims=True) + LN_EPS) * params["img_g"] + params["img_beta"]

    xt = jnp.concatenate([x_comment, x_title], axis=1)
    tw_ref = params["txt_w"].astype(jnp.bfloat16).astype(jnp.float32)
    yt = jnp.tanh(xt.astype(jnp.bfloat16).astype(jnp.float32) @ tw_ref + params["txt_b"])
    yt = (yt - yt.mean(-1, keepdims=True)) * jax.lax.rsqrt(
        yt.var(-1, keepdims=True) + LN_EPS) * params["txt_g"] + params["txt_beta"]

    assert img_emb.shape == (B, HIDDEN) and txt_emb.shape == (B, HIDDEN)
    assert jnp.allclose(img_emb, yi, atol=5e-3), "image branch mismatch"
    assert jnp.allclose(txt_emb, yt, atol=5e-3), "text branch mismatch"

    print("KERNEL_OK")
</pallas_src>

<mosaic_0001>
module attributes {stable_mosaic.version = 11 : i64} {
  func.func @_ranker_kernel(%arg0: i32, %arg1: memref<8x64x256xbf16, #tpu.memory_space<vmem>>, %arg2: memref<8x40xf32, #tpu.memory_space<vmem>>, %arg3: memref<64x128xbf16, #tpu.memory_space<vmem>>, %arg4: memref<40x128xbf16, #tpu.memory_space<vmem>>, %arg5: memref<8x128xf32, #tpu.memory_space<vmem>>, %arg6: memref<8x128xf32, #tpu.memory_space<vmem>>, %arg7: memref<8x128xf32, #tpu.memory_space<vmem>>) attributes {dimension_semantics = [#tpu.dimension_semantics<parallel>], iteration_bounds = array<i64: 1>, scalar_prefetch = 0 : i64, scratch_operands = 0 : i64, tpu.core_type = #tpu.core_type<tc>, window_params = [{transform_indices = @transform_0, window_bounds = array<i64: 8, 64, 256>}, {transform_indices = @transform_1, window_bounds = array<i64: 8, 40>}, {pipeline_mode = #tpu.pipeline_mode<synchronous>, transform_indices = @transform_2, window_bounds = array<i64: 64, 128>}, {pipeline_mode = #tpu.pipeline_mode<synchronous>, transform_indices = @transform_3, window_bounds = array<i64: 40, 128>}, {pipeline_mode = #tpu.pipeline_mode<synchronous>, transform_indices = @transform_4, window_bounds = array<i64: 8, 128>}, {transform_indices = @transform_5, window_bounds = array<i64: 8, 128>}, {transform_indices = @transform_6, window_bounds = array<i64: 8, 128>}]} {
    %c0 = arith.constant 0 : index
    %c0_0 = arith.constant 0 : index
    %0 = vector.load %arg5[%c0, %c0_0] : memref<8x128xf32, #tpu.memory_space<vmem>>, vector<8x128xf32>
    %c0_1 = arith.constant 0 : index
    %c0_2 = arith.constant 0 : index
    %c0_3 = arith.constant 0 : index
    %1 = vector.load %arg1[%c0_1, %c0_2, %c0_3] : memref<8x64x256xbf16, #tpu.memory_space<vmem>>, vector<8x64x256xbf16>
    %2 = arith.extf %1 : vector<8x64x256xbf16> to vector<8x64x256xf32>
    %cst = arith.constant dense<0.000000e+00> : vector<8x64xf32>
    %3 = vector.multi_reduction <add>, %2, %cst [2] : vector<8x64x256xf32> to vector<8x64xf32>
    %4 = arith.truncf %3 : vector<8x64xf32> to vector<8x64xbf16>
    %c0_4 = arith.constant 0 : index
    %c0_5 = arith.constant 0 : index
    %5 = vector.load %arg3[%c0_4, %c0_5] : memref<64x128xbf16, #tpu.memory_space<vmem>>, vector<64x128xbf16>
    %cst_6 = arith.constant dense<0.000000e+00> : vector<8x128xf32>
    %6 = tpu.matmul %4, %5, %cst_6 {dimension_numbers = #tpu.dot_dimension_numbers<[1], [0], [0], [1], [0, 0, 1, 1], [], []>} : vector<8x64xbf16>, vector<64x128xbf16>, vector<8x128xf32> -> vector<8x128xf32>
    %7 = vector.extract_strided_slice %0 {offsets = [0, 0], sizes = [1, 128], strides = [1, 1]} : vector<8x128xf32> to vector<1x128xf32>
    %8 = vector.broadcast %7 : vector<1x128xf32> to vector<8x128xf32>
    %9 = arith.addf %6, %8 : vector<8x128xf32>
    %10 = vector.extract_strided_slice %0 {offsets = [1, 0], sizes = [1, 128], strides = [1, 1]} : vector<8x128xf32> to vector<1x128xf32>
    %11 = vector.extract_strided_slice %0 {offsets = [2, 0], sizes = [1, 128], strides = [1, 1]} : vector<8x128xf32> to vector<1x128xf32>
    %12 = math.tanh %9 : vector<8x128xf32>
    %13 = tpu.iota {dimensions = array<i32: 1>} : vector<8x128xi32>
    %c32_i32 = arith.constant 32 : i32
    %14 = vector.broadcast %c32_i32 : i32 to vector<8x128xi32>
    %15 = arith.cmpi slt, %13, %14 : vector<8x128xi32>
    %16 = arith.extui %15 : vector<8x128xi1> to vector<8x128xi32>
    %17 = arith.sitofp %16 : vector<8x128xi32> to vector<8x128xf32>
    %18 = arith.mulf %12, %17 : vector<8x128xf32>
    %cst_7 = arith.constant dense<0.000000e+00> : vector<8xf32>
    %19 = vector.multi_reduction <add>, %18, %cst_7 [1] : vector<8x128xf32> to vector<8xf32>
    %20 = vector.shape_cast %19 : vector<8xf32> to vector<8x1xf32>
    %cst_8 = arith.constant 3.125000e-02 : f32
    %21 = vector.broadcast %cst_8 : f32 to vector<8x1xf32>
    %22 = arith.mulf %20, %21 : vector<8x1xf32>
    %23 = vector.broadcast %22 : vector<8x1xf32> to vector<8x128xf32>
    %24 = arith.subf %18, %23 : vector<8x128xf32>
    %25 = arith.mulf %24, %17 : vector<8x128xf32>
    %26 = arith.mulf %25, %25 : vector<8x128xf32>
    %cst_9 = arith.constant dense<0.000000e+00> : vector<8xf32>
    %27 = vector.multi_reduction <add>, %26, %cst_9 [1] : vector<8x128xf32> to vector<8xf32>
    %28 = vector.shape_cast %27 : vector<8xf32> to vector<8x1xf32>
    %cst_10 = arith.constant 3.125000e-02 : f32
    %29 = vector.broadcast %cst_10 : f32 to vector<8x1xf32>
    %30 = arith.mulf %28, %29 : vector<8x1xf32>
    %cst_11 = arith.constant 9.99999974E-6 : f32
    %31 = vector.broadcast %cst_11 : f32 to vector<8x1xf32>
    %32 = arith.addf %30, %31 : vector<8x1xf32>
    %33 = math.rsqrt %32 : vector<8x1xf32>
    %34 = vector.broadcast %33 : vector<8x1xf32> to vector<8x128xf32>
    %35 = arith.mulf %25, %34 : vector<8x128xf32>
    %36 = vector.broadcast %10 : vector<1x128xf32> to vector<8x128xf32>
    %37 = arith.mulf %35, %36 : vector<8x128xf32>
    %38 = vector.broadcast %11 : vector<1x128xf32> to vector<8x128xf32>
    %39 = arith.addf %37, %38 : vector<8x128xf32>
    %c0_12 = arith.constant 0 : index
    %c0_13 = arith.constant 0 : index
    %40 = vector.load %arg6[%c0_12, %c0_13] : memref<8x128xf32, #tpu.memory_space<vmem>>, vector<8x128xf32>
    tpu.vector_store %arg6[%c0_12, %c0_13], %39 {strides = array<i32>} : memref<8x128xf32, #tpu.memory_space<vmem>>, vector<8x128xf32>,
    %c0_14 = arith.constant 0 : index
    %c0_15 = arith.constant 0 : index
    %41 = vector.load %arg2[%c0_14, %c0_15] : memref<8x40xf32, #tpu.memory_space<vmem>>, vector<8x40xf32>
    %42 = arith.truncf %41 : vector<8x40xf32> to vector<8x40xbf16>
    %c0_16 = arith.constant 0 : index
    %c0_17 = arith.constant 0 : index
    %43 = vector.load %arg4[%c0_16, %c0_17] : memref<40x128xbf16, #tpu.memory_space<vmem>>, vector<40x128xbf16>
    %cst_18 = arith.constant dense<0.000000e+00> : vector<8x128xf32>
    %44 = tpu.matmul %42, %43, %cst_18 {dimension_numbers = #tpu.dot_dimension_numbers<[1], [0], [0], [1], [0, 0, 1, 1], [], []>} : vector<8x40xbf16>, vector<40x128xbf16>, vector<8x128xf32> -> vector<8x128xf32>
    %45 = vector.extract_strided_slice %0 {offsets = [3, 0], sizes = [1, 128], strides = [1, 1]} : vector<8x128xf32> to vector<1x128xf32>
    %46 = vector.broadcast %45 : vector<1x128xf32> to vector<8x128xf32>
    %47 = arith.addf %44, %46 : vector<8x128xf32>
    %48 = vector.extract_strided_slice %0 {offsets = [4, 0], sizes = [1, 128], strides = [1, 1]} : vector<8x128xf32> to vector<1x128xf32>
    %49 = vector.extract_strided_slice %0 {offsets = [5, 0], sizes = [1, 128], strides = [1, 1]} : vector<8x128xf32> to vector<1x128xf32>
    %50 = math.tanh %47 : vector<8x128xf32>
    %51 = tpu.iota {dimensions = array<i32: 1>} : vector<8x128xi32>
    %c32_i32_19 = arith.constant 32 : i32
    %52 = vector.broadcast %c32_i32_19 : i32 to vector<8x128xi32>
    %53 = arith.cmpi slt, %51, %52 : vector<8x128xi32>
    %54 = arith.extui %53 : vector<8x128xi1> to vector<8x128xi32>
    %55 = arith.sitofp %54 : vector<8x128xi32> to vector<8x128xf32>
    %56 = arith.mulf %50, %55 : vector<8x128xf32>
    %cst_20 = arith.constant dense<0.000000e+00> : vector<8xf32>
    %57 = vector.multi_reduction <add>, %56, %cst_20 [1] : vector<8x128xf32> to vector<8xf32>
    %58 = vector.shape_cast %57 : vector<8xf32> to vector<8x1xf32>
    %cst_21 = arith.constant 3.125000e-02 : f32
    %59 = vector.broadcast %cst_21 : f32 to vector<8x1xf32>
    %60 = arith.mulf %58, %59 : vector<8x1xf32>
    %61 = vector.broadcast %60 : vector<8x1xf32> to vector<8x128xf32>
    %62 = arith.subf %56, %61 : vector<8x128xf32>
    %63 = arith.mulf %62, %55 : vector<8x128xf32>
    %64 = arith.mulf %63, %63 : vector<8x128xf32>
    %cst_22 = arith.constant dense<0.000000e+00> : vector<8xf32>
    %65 = vector.multi_reduction <add>, %64, %cst_22 [1] : vector<8x128xf32> to vector<8xf32>
    %66 = vector.shape_cast %65 : vector<8xf32> to vector<8x1xf32>
    %cst_23 = arith.constant 3.125000e-02 : f32
    %67 = vector.broadcast %cst_23 : f32 to vector<8x1xf32>
    %68 = arith.mulf %66, %67 : vector<8x1xf32>
    %cst_24 = arith.constant 9.99999974E-6 : f32
    %69 = vector.broadcast %cst_24 : f32 to vector<8x1xf32>
    %70 = arith.addf %68, %69 : vector<8x1xf32>
    %71 = math.rsqrt %70 : vector<8x1xf32>
    %72 = vector.broadcast %71 : vector<8x1xf32> to vector<8x128xf32>
    %73 = arith.mulf %63, %72 : vector<8x128xf32>
    %74 = vector.broadcast %48 : vector<1x128xf32> to vector<8x128xf32>
    %75 = arith.mulf %73, %74 : vector<8x128xf32>
    %76 = vector.broadcast %49 : vector<1x128xf32> to vector<8x128xf32>
    %77 = arith.addf %75, %76 : vector<8x128xf32>
    %c0_25 = arith.constant 0 : index
    %c0_26 = arith.constant 0 : index
    %78 = vector.load %arg7[%c0_25, %c0_26] : memref<8x128xf32, #tpu.memory_space<vmem>>, vector<8x128xf32>
    tpu.vector_store %arg7[%c0_25, %c0_26], %77 {strides = array<i32>} : memref<8x128xf32, #tpu.memory_space<vmem>>, vector<8x128xf32>,
    return
  }
  func.func @transform_0(%arg0: i32) -> (i32, i32, i32) {
    %c0_i32 = arith.constant 0 : i32
    %c0_i32_0 = arith.constant 0 : i32
    %c0_i32_1 = arith.constant 0 : i32
    return %arg0, %c0_i32, %c0_i32_0 : i32, i32, i32
  }
  func.func @transform_1(%arg0: i32) -> (i32, i32) {
    %c0_i32 = arith.constant 0 : i32
    %c0_i32_0 = arith.constant 0 : i32
    return %arg0, %c0_i32 : i32, i32
  }
  func.func @transform_2(%arg0: i32) -> (i32, i32) {
    %c0_i32 = arith.constant 0 : i32
    %c0_i32_0 = arith.constant 0 : i32
    %c0_i32_1 = arith.constant 0 : i32
    return %c0_i32, %c0_i32_0 : i32, i32
  }
  func.func @transform_3(%arg0: i32) -> (i32, i32) {
    %c0_i32 = arith.constant 0 : i32
    %c0_i32_0 = arith.constant 0 : i32
    %c0_i32_1 = arith.constant 0 : i32
    return %c0_i32, %c0_i32_0 : i32, i32
  }
  func.func @transform_4(%arg0: i32) -> (i32, i32) {
    %c0_i32 = arith.constant 0 : i32
    %c0_i32_0 = arith.constant 0 : i32
    %c0_i32_1 = arith.constant 0 : i32
    return %c0_i32, %c0_i32_0 : i32, i32
  }
  func.func @transform_5(%arg0: i32) -> (i32, i32) {
    %c0_i32 = arith.constant 0 : i32
    %c0_i32_0 = arith.constant 0 : i32
    return %arg0, %c0_i32 : i32, i32
  }
  func.func @transform_6(%arg0: i32) -> (i32, i32) {
    %c0_i32 = arith.constant 0 : i32
    %c0_i32_0 = arith.constant 0 : i32
    return %arg0, %c0_i32 : i32, i32
  }
}

module attributes {stable_mosaic.version = 11 : i64} {
  func.func @_ranker_kernel(%arg0: i32, %arg1: memref<8x64x256xbf16, #tpu.memory_space<vmem>>, %arg2: memref<8x40xf32, #tpu.memory_space<vmem>>, %arg3: memref<64x128xbf16, #tpu.memory_space<vmem>>, %arg4: memref<40x128xbf16, #tpu.memory_space<vmem>>, %arg5: memref<8x128xf32, #tpu.memory_space<vmem>>, %arg6: memref<8x128xf32, #tpu.memory_space<vmem>>, %arg7: memref<8x128xf32, #tpu.memory_space<vmem>>) attributes {dimension_semantics = [#tpu.dimension_semantics<parallel>], iteration_bounds = array<i64: 1>, scalar_prefetch = 0 : i64, scratch_operands = 0 : i64, tpu.core_type = #tpu.core_type<tc>, window_params = [{transform_indices = @transform_0, window_bounds = array<i64: 8, 64, 256>}, {transform_indices = @transform_1, window_bounds = array<i64: 8, 40>}, {pipeline_mode = #tpu.pipeline_mode<synchronous>, transform_indices = @transform_2, window_bounds = array<i64: 64, 128>}, {pipeline_mode = #tpu.pipeline_mode<synchronous>, transform_indices = @transform_3, window_bounds = array<i64: 40, 128>}, {pipeline_mode = #tpu.pipeline_mode<synchronous>, transform_indices = @transform_4, window_bounds = array<i64: 8, 128>}, {transform_indices = @transform_5, window_bounds = array<i64: 8, 128>}, {transform_indices = @transform_6, window_bounds = array<i64: 8, 128>}]} {
    %c0 = arith.constant 0 : index
    %c0_0 = arith.constant 0 : index
    %0 = vector.load %arg5[%c0, %c0_0] : memref<8x128xf32, #tpu.memory_space<vmem>>, vector<8x128xf32>
    %c0_1 = arith.constant 0 : index
    %c0_2 = arith.constant 0 : index
    %c0_3 = arith.constant 0 : index
    %1 = vector.load %arg1[%c0_1, %c0_2, %c0_3] : memref<8x64x256xbf16, #tpu.memory_space<vmem>>, vector<8x64x256xbf16>
    %2 = arith.extf %1 : vector<8x64x256xbf16> to vector<8x64x256xf32>
    %cst = arith.constant dense<0.000000e+00> : vector<8x64xf32>
    %3 = vector.multi_reduction <add>, %2, %cst [2] : vector<8x64x256xf32> to vector<8x64xf32>
    %4 = arith.truncf %3 : vector<8x64xf32> to vector<8x64xbf16>
    %c0_4 = arith.constant 0 : index
    %c0_5 = arith.constant 0 : index
    %5 = vector.load %arg3[%c0_4, %c0_5] : memref<64x128xbf16, #tpu.memory_space<vmem>>, vector<64x128xbf16>
    %cst_6 = arith.constant dense<0.000000e+00> : vector<8x128xf32>
    %6 = tpu.matmul %4, %5, %cst_6 {dimension_numbers = #tpu.dot_dimension_numbers<[1], [0], [0], [1], [0, 0, 1, 1], [], []>} : vector<8x64xbf16>, vector<64x128xbf16>, vector<8x128xf32> -> vector<8x128xf32>
    %7 = vector.extract_strided_slice %0 {offsets = [0, 0], sizes = [1, 128], strides = [1, 1]} : vector<8x128xf32> to vector<1x128xf32>
    %8 = vector.broadcast %7 : vector<1x128xf32> to vector<8x128xf32>
    %9 = arith.addf %6, %8 : vector<8x128xf32>
    %10 = vector.extract_strided_slice %0 {offsets = [1, 0], sizes = [1, 128], strides = [1, 1]} : vector<8x128xf32> to vector<1x128xf32>
    %11 = vector.extract_strided_slice %0 {offsets = [2, 0], sizes = [1, 128], strides = [1, 1]} : vector<8x128xf32> to vector<1x128xf32>
    %12 = math.tanh %9 : vector<8x128xf32>
    %13 = tpu.iota {dimensions = array<i32: 1>} : vector<8x128xi32>
    %c32_i32 = arith.constant 32 : i32
    %14 = vector.broadcast %c32_i32 : i32 to vector<8x128xi32>
    %15 = arith.cmpi slt, %13, %14 : vector<8x128xi32>
    %16 = arith.extui %15 : vector<8x128xi1> to vector<8x128xi32>
    %17 = arith.sitofp %16 : vector<8x128xi32> to vector<8x128xf32>
    %18 = arith.mulf %12, %17 : vector<8x128xf32>
    %cst_7 = arith.constant dense<0.000000e+00> : vector<8xf32>
    %19 = vector.multi_reduction <add>, %18, %cst_7 [1] : vector<8x128xf32> to vector<8xf32>
    %20 = vector.shape_cast %19 : vector<8xf32> to vector<8x1xf32>
    %cst_8 = arith.constant 3.125000e-02 : f32
    %21 = vector.broadcast %cst_8 : f32 to vector<8x1xf32>
    %22 = arith.mulf %20, %21 : vector<8x1xf32>
    %23 = vector.broadcast %22 : vector<8x1xf32> to vector<8x128xf32>
    %24 = arith.subf %18, %23 : vector<8x128xf32>
    %25 = arith.mulf %24, %17 : vector<8x128xf32>
    %26 = arith.mulf %25, %25 : vector<8x128xf32>
    %cst_9 = arith.constant dense<0.000000e+00> : vector<8xf32>
    %27 = vector.multi_reduction <add>, %26, %cst_9 [1] : vector<8x128xf32> to vector<8xf32>
    %28 = vector.shape_cast %27 : vector<8xf32> to vector<8x1xf32>
    %cst_10 = arith.constant 3.125000e-02 : f32
    %29 = vector.broadcast %cst_10 : f32 to vector<8x1xf32>
    %30 = arith.mulf %28, %29 : vector<8x1xf32>
    %cst_11 = arith.constant 9.99999974E-6 : f32
    %31 = vector.broadcast %cst_11 : f32 to vector<8x1xf32>
    %32 = arith.addf %30, %31 : vector<8x1xf32>
    %33 = math.rsqrt %32 : vector<8x1xf32>
    %34 = vector.broadcast %33 : vector<8x1xf32> to vector<8x128xf32>
    %35 = arith.mulf %25, %34 : vector<8x128xf32>
    %36 = vector.broadcast %10 : vector<1x128xf32> to vector<8x128xf32>
    %37 = arith.mulf %35, %36 : vector<8x128xf32>
    %38 = vector.broadcast %11 : vector<1x128xf32> to vector<8x128xf32>
    %39 = arith.addf %37, %38 : vector<8x128xf32>
    %c0_12 = arith.constant 0 : index
    %c0_13 = arith.constant 0 : index
    %40 = vector.load %arg6[%c0_12, %c0_13] : memref<8x128xf32, #tpu.memory_space<vmem>>, vector<8x128xf32>
    tpu.vector_store %arg6[%c0_12, %c0_13], %39 {strides = array<i32>} : memref<8x128xf32, #tpu.memory_space<vmem>>, vector<8x128xf32>,
    %c0_14 = arith.constant 0 : index
    %c0_15 = arith.constant 0 : index
    %41 = vector.load %arg2[%c0_14, %c0_15] : memref<8x40xf32, #tpu.memory_space<vmem>>, vector<8x40xf32>
    %42 = arith.truncf %41 : vector<8x40xf32> to vector<8x40xbf16>
    %c0_16 = arith.constant 0 : index
    %c0_17 = arith.constant 0 : index
    %43 = vector.load %arg4[%c0_16, %c0_17] : memref<40x128xbf16, #tpu.memory_space<vmem>>, vector<40x128xbf16>
    %cst_18 = arith.constant dense<0.000000e+00> : vector<8x128xf32>
    %44 = tpu.matmul %42, %43, %cst_18 {dimension_numbers = #tpu.dot_dimension_numbers<[1], [0], [0], [1], [0, 0, 1, 1], [], []>} : vector<8x40xbf16>, vector<40x128xbf16>, vector<8x128xf32> -> vector<8x128xf32>
    %45 = vector.extract_strided_slice %0 {offsets = [3, 0], sizes = [1, 128], strides = [1, 1]} : vector<8x128xf32> to vector<1x128xf32>
    %46 = vector.broadcast %45 : vector<1x128xf32> to vector<8x128xf32>
    %47 = arith.addf %44, %46 : vector<8x128xf32>
    %48 = vector.extract_strided_slice %0 {offsets = [4, 0], sizes = [1, 128], strides = [1, 1]} : vector<8x128xf32> to vector<1x128xf32>
    %49 = vector.extract_strided_slice %0 {offsets = [5, 0], sizes = [1, 128], strides = [1, 1]} : vector<8x128xf32> to vector<1x128xf32>
    %50 = math.tanh %47 : vector<8x128xf32>
    %51 = tpu.iota {dimensions = array<i32: 1>} : vector<8x128xi32>
    %c32_i32_19 = arith.constant 32 : i32
    %52 = vector.broadcast %c32_i32_19 : i32 to vector<8x128xi32>
    %53 = arith.cmpi slt, %51, %52 : vector<8x128xi32>
    %54 = arith.extui %53 : vector<8x128xi1> to vector<8x128xi32>
    %55 = arith.sitofp %54 : vector<8x128xi32> to vector<8x128xf32>
    %56 = arith.mulf %50, %55 : vector<8x128xf32>
    %cst_20 = arith.constant dense<0.000000e+00> : vector<8xf32>
    %57 = vector.multi_reduction <add>, %56, %cst_20 [1] : vector<8x128xf32> to vector<8xf32>
    %58 = vector.shape_cast %57 : vector<8xf32> to vector<8x1xf32>
    %cst_21 = arith.constant 3.125000e-02 : f32
    %59 = vector.broadcast %cst_21 : f32 to vector<8x1xf32>
    %60 = arith.mulf %58, %59 : vector<8x1xf32>
    %61 = vector.broadcast %60 : vector<8x1xf32> to vector<8x128xf32>
    %62 = arith.subf %56, %61 : vector<8x128xf32>
    %63 = arith.mulf %62, %55 : vector<8x128xf32>
    %64 = arith.mulf %63, %63 : vector<8x128xf32>
    %cst_22 = arith.constant dense<0.000000e+00> : vector<8xf32>
    %65 = vector.multi_reduction <add>, %64, %cst_22 [1] : vector<8x128xf32> to vector<8xf32>
    %66 = vector.shape_cast %65 : vector<8xf32> to vector<8x1xf32>
    %cst_23 = arith.constant 3.125000e-02 : f32
    %67 = vector.broadcast %cst_23 : f32 to vector<8x1xf32>
    %68 = arith.mulf %66, %67 : vector<8x1xf32>
    %cst_24 = arith.constant 9.99999974E-6 : f32
    %69 = vector.broadcast %cst_24 : f32 to vector<8x1xf32>
    %70 = arith.addf %68, %69 : vector<8x1xf32>
    %71 = math.rsqrt %70 : vector<8x1xf32>
    %72 = vector.broadcast %71 : vector<8x1xf32> to vector<8x128xf32>
    %73 = arith.mulf %63, %72 : vector<8x128xf32>
    %74 = vector.broadcast %48 : vector<1x128xf32> to vector<8x128xf32>
    %75 = arith.mulf %73, %74 : vector<8x128xf32>
    %76 = vector.broadcast %49 : vector<1x128xf32> to vector<8x128xf32>
    %77 = arith.addf %75, %76 : vector<8x128xf32>
    %c0_25 = arith.constant 0 : index
    %c0_26 = arith.constant 0 : index
    %78 = vector.load %arg7[%c0_25, %c0_26] : memref<8x128xf32, #tpu.memory_space<vmem>>, vector<8x128xf32>
    tpu.vector_store %arg7[%c0_25, %c0_26], %77 {strides = array<i32>} : memref<8x128xf32, #tpu.memory_space<vmem>>, vector<8x128xf32>,
    return
  }
  func.func @transform_0(%arg0: i32) -> (i32, i32, i32) {
    %c0_i32 = arith.constant 0 : i32
    %c0_i32_0 = arith.constant 0 : i32
    %c0_i32_1 = arith.constant 0 : i32
    return %arg0, %c0_i32, %c0_i32_0 : i32, i32, i32
  }
  func.func @transform_1(%arg0: i32) -> (i32, i32) {
    %c0_i32 = arith.constant 0 : i32
    %c0_i32_0 = arith.constant 0 : i32
    return %arg0, %c0_i32 : i32, i32
  }
  func.func @transform_2(%arg0: i32) -> (i32, i32) {
    %c0_i32 = arith.constant 0 : i32
    %c0_i32_0 = arith.constant 0 : i32
    %c0_i32_1 = arith.constant 0 : i32
    return %c0_i32, %c0_i32_0 : i32, i32
  }
  func.func @transform_3(%arg0: i32) -> (i32, i32) {
    %c0_i32 = arith.constant 0 : i32
    %c0_i32_0 = arith.constant 0 : i32
    %c0_i32_1 = arith.constant 0 : i32
    return %c0_i32, %c0_i32_0 : i32, i32
  }
  func.func @transform_4(%arg0: i32) -> (i32, i32) {
    %c0_i32 = arith.constant 0 : i32
    %c0_i32_0 = arith.constant 0 : i32
    %c0_i32_1 = arith.constant 0 : i32
    return %c0_i32, %c0_i32_0 : i32, i32
  }
  func.func @transform_5(%arg0: i32) -> (i32, i32) {
    %c0_i32 = arith.constant 0 : i32
    %c0_i32_0 = arith.constant 0 : i32
    return %arg0, %c0_i32 : i32, i32
  }
  func.func @transform_6(%arg0: i32) -> (i32, i32) {
    %c0_i32 = arith.constant 0 : i32
    %c0_i32_0 = arith.constant 0 : i32
    return %arg0, %c0_i32 : i32, i32
  }
}

</mosaic_0001>

<llo_original>
// kernel: tpu_custom_call.1
$region0: #{tpu_custom_call.1}
  #allocation0 [shape = 'u32[]', space=smem, size = 0x4, offset = 0x4, fixed_abs, tag = 'smem constant byte address 0x4 - core index']
  #allocation1 [shape = 'u32[144,128]{1,0:T(1,128)}', space=vmem, size = 0x12000, scoped, tag = 'internal scratch']
  %s0 = inlined_call_operand.hbm [shape: bf16[8,64,256], index: 0, kind: input, shape index: {}]
  %s1 = inlined_call_operand.hbm [shape: f32[8,40], index: 1, kind: input, shape index: {}]
  %s2 = inlined_call_operand.hbm [shape: bf16[64,128], index: 2, kind: input, shape index: {}]
  %s3 = inlined_call_operand.hbm [shape: bf16[40,128], index: 3, kind: input, shape index: {}]
  %s4 = inlined_call_operand.hbm [shape: f32[8,128], index: 4, kind: input, shape index: {}]
  %s5 = inlined_call_operand.hbm [shape: f32[8,128], index: 5, kind: output, shape index: {0}]
  %s6 = inlined_call_operand.hbm [shape: f32[8,128], index: 6, kind: output, shape index: {1}]
  %7 = xla_tuple %s5, %s6
  %s8 = sld [smem:[#allocation0]]
  $region58: #{tpu_custom_call.1} parent=0
    _
  %s10 = ssub.s32 1, %s8
  %s11 = scalar_select 0, %s10, %s8
  $region1: #{tpu_custom_call.1} parent=0
    #allocation2 [shape = 'u8[262144]{0}', space=vmem, size = 0x40000, scoped, tag = 'input window, operand 0, single buffered']
    #allocation3 [shape = 's32[1]{0}', space=sflag, size = 0x4, scoped, tag = 'scoped memory for tpu_custom_call.1']
    #allocation4 [shape = 's32[1]{0}', space=sflag, size = 0x4, scoped, tag = 'scoped memory for tpu_custom_call.1']
    #allocation5 [shape = 'u8[4096]{0}', space=vmem, size = 0x1000, scoped, tag = 'input window, operand 1, single buffered']
    #allocation6 [shape = 's32[1]{0}', space=sflag, size = 0x4, scoped, tag = 'scoped memory for tpu_custom_call.1']
    #allocation7 [shape = 'u8[16384]{0}', space=vmem, size = 0x4000, scoped, tag = 'input window, operand 2, single buffered']
    #allocation8 [shape = 'u8[10240]{0}', space=vmem, size = 0x2800, scoped, tag = 'input window, operand 3, single buffered']
    #allocation9 [shape = 's32[1]{0}', space=sflag, size = 0x4, scoped, tag = 'scoped memory for tpu_custom_call.1']
    #allocation10 [shape = 'u8[4096]{0}', space=vmem, size = 0x1000, scoped, tag = 'input window, operand 4, single buffered']
    #allocation11 [shape = 'u8[4096]{0}', space=vmem, size = 0x1000, scoped, tag = 'output window, operand 0, single buffered']
    #allocation12 [shape = 'u8[4096]{0}', space=vmem, size = 0x1000, scoped, tag = 'output window, operand 1, single buffered']
    #allocation13 [shape = 's32[1]{0}', space=sflag, size = 0x4, scoped, tag = 'scoped memory for tpu_custom_call.1']
    %12 = vsyncpa [#allocation3], 0
    %13 = vsyncpa [#allocation6], 0
    %14 = vsyncpa [#allocation9], 0
    %15 = vsyncpa [#allocation4], 0
    %16 = vsyncpa [#allocation13], 0
    // Predicated region
    $region2: #{tpu_custom_call.1} parent=1 // pred_check
      _
    $region3: #{tpu_custom_call.1} parent=1 // pred_check_branch
      %18 = sbr.rel (0) target = $region5
    $region4: #{tpu_custom_call.1} parent=1 // pred_region
      %s20 = ssub.s32 8192, 8192
      %21 = vsyncadd [#allocation3], %s20
      %s22 = sshll.u32 [#allocation2], 4
      %s23 = int_to_ptr.vmem [resolvable:$true] %s22
      %28 = dma.hbm_to_vmem [thread:$0]  %s0, 8192, %s23, [#allocation3], 128, 128, 8
    $region5: #{tpu_custom_call.1} parent=1 // pred_fallthru
      _
    // Predicated region
    $region6: #{tpu_custom_call.1} parent=1 // pred_check
      _
    $region7: #{tpu_custom_call.1} parent=1 // pred_check_branch
      %30 = sbr.rel (0) target = $region9
    $region8: #{tpu_custom_call.1} parent=1 // pred_region
      %s32 = ssub.s32 128, 128
      %33 = vsyncadd [#allocation6], %s32
      %s35 = sshll.u32 [#allocation5], 4
      %s36 = int_to_ptr.vmem [resolvable:$true] %s35
      %38 = dma.hbm_to_vmem [thread:$0]  %s1, 128, %s36, [#allocation6]
    $region9: #{tpu_custom_call.1} parent=1 // pred_fallthru
      _
    // Predicated region
    $region10: #{tpu_custom_call.1} parent=1 // pred_check
      _
    $region11: #{tpu_custom_call.1} parent=1 // pred_check_branch
      %40 = sbr.rel (0) target = $region13
    $region12: #{tpu_custom_call.1} parent=1 // pred_region
      %s42 = ssub.s32 512, 512
      %43 = vsyncadd [#allocation6], %s42
      %s44 = sshll.u32 [#allocation7], 4
      %s45 = int_to_ptr.vmem [resolvable:$true] %s44
      %50 = dma.hbm_to_vmem [thread:$0]  %s2, 512, %s45, [#allocation6], 64, 64, 4
    $region13: #{tpu_custom_call.1} parent=1 // pred_fallthru
      _
    // Predicated region
    $region14: #{tpu_custom_call.1} parent=1 // pred_check
      _
    $region15: #{tpu_custom_call.1} parent=1 // pred_check_branch
      %52 = sbr.rel (0) target = $region17
    $region16: #{tpu_custom_call.1} parent=1 // pred_region
      %s54 = ssub.s32 320, 320
      %55 = vsyncadd [#allocation9], %s54
      %s56 = sshll.u32 [#allocation8], 4
      %s57 = int_to_ptr.vmem [resolvable:$true] %s56
      %62 = dma.hbm_to_vmem [thread:$0]  %s3, 320, %s57, [#allocation9], 64, 64, 4
    $region17: #{tpu_custom_call.1} parent=1 // pred_fallthru
      _
    // Predicated region
    $region18: #{tpu_custom_call.1} parent=1 // pred_check
      _
    $region19: #{tpu_custom_call.1} parent=1 // pred_check_branch
      %64 = sbr.rel (0) target = $region21
    $region20: #{tpu_custom_call.1} parent=1 // pred_region
      %s66 = ssub.s32 128, 128
      %67 = vsyncadd [#allocation9], %s66
      %s69 = sshll.u32 [#allocation10], 4
      %s70 = int_to_ptr.vmem [resolvable:$true] %s69
      %72 = dma.hbm_to_vmem [thread:$0]  %s4, 128, %s70, [#allocation9]
    $region21: #{tpu_custom_call.1} parent=1 // pred_fallthru
      _
    // Predicated region
    $region22: #{tpu_custom_call.1} parent=1 // pred_check
      _
    $region23: #{tpu_custom_call.1} parent=1 // pred_check_branch
      %74 = sbr.rel (0) target = $region25
    $region24: #{tpu_custom_call.1} parent=1 // pred_region
      %75 = dma.done [#allocation3], 8192
    $region25: #{tpu_custom_call.1} parent=1 // pred_fallthru
      _
    // Predicated region
    $region26: #{tpu_custom_call.1} parent=1 // pred_check
      _
    $region27: #{tpu_custom_call.1} parent=1 // pred_check_branch
      %77 = sbr.rel (0) target = $region29
    $region28: #{tpu_custom_call.1} parent=1 // pred_region
      %78 = dma.done [#allocation6], 128
    $region29: #{tpu_custom_call.1} parent=1 // pred_fallthru
      _
    // Predicated region
    $region30: #{tpu_custom_call.1} parent=1 // pred_check
      _
    $region31: #{tpu_custom_call.1} parent=1 // pred_check_branch
      %80 = sbr.rel (0) target = $region33
    $region32: #{tpu_custom_call.1} parent=1 // pred_region
      %81 = dma.done [#allocation6], 512
    $region33: #{tpu_custom_call.1} parent=1 // pred_fallthru
      _
    // Predicated region
    $region34: #{tpu_custom_call.1} parent=1 // pred_check
      _
    $region35: #{tpu_custom_call.1} parent=1 // pred_check_branch
      %83 = sbr.rel (0) target = $region37
    $region36: #{tpu_custom_call.1} parent=1 // pred_region
      %84 = dma.done [#allocation9], 320
    $region37: #{tpu_custom_call.1} parent=1 // pred_fallthru
      _
    // Predicated region
    $region38: #{tpu_custom_call.1} parent=1 // pred_check
      _
    $region39: #{tpu_custom_call.1} parent=1 // pred_check_branch
      %86 = sbr.rel (0) target = $region41
    $region40: #{tpu_custom_call.1} parent=1 // pred_region
      %87 = dma.done [#allocation9], 128
    $region41: #{tpu_custom_call.1} parent=1 // pred_fallthru
      _
    %v89 = vld [vmem:[#allocation10] sm:$0xff]
    %v90 = vld [vmem:[#allocation2] sm:$0xff]
    %v91 = vld [vmem:[#allocation2 + $0x8] sm:$0xff]
    %v92 = vld [vmem:[#allocation2 + $0x10] sm:$0xff]
    %v93 = vld [vmem:[#allocation2 + $0x18] sm:$0xff]
    %v94 = vld [vmem:[#allocation2 + $0x20] sm:$0xff]
    %v95 = vld [vmem:[#allocation2 + $0x28] sm:$0xff]
    %v96 = vld [vmem:[#allocation2 + $0x30] sm:$0xff]
    %v97 = vld [vmem:[#allocation2 + $0x38] sm:$0xff]
    %v98 = vld [vmem:[#allocation2 + $0x40] sm:$0xff]
    %v99 = vld [vmem:[#allocation2 + $0x48] sm:$0xff]
    %v100 = vld [vmem:[#allocation2 + $0x50] sm:$0xff]
    %v101 = vld [vmem:[#allocation2 + $0x58] sm:$0xff]
    %v102 = vld [vmem:[#allocation2 + $0x60] sm:$0xff]
    %v103 = vld [vmem:[#allocation2 + $0x68] sm:$0xff]
    %v104 = vld [vmem:[#allocation2 + $0x70] sm:$0xff]
    %v105 = vld [vmem:[#allocation2 + $0x78] sm:$0xff]
    %v106 = vld [vmem:[#allocation2 + $0x80] sm:$0xff]
    %v107 = vld [vmem:[#allocation2 + $0x88] sm:$0xff]
    %v108 = vld [vmem:[#allocation2 + $0x90] sm:$0xff]
    %v109 = vld [vmem:[#allocation2 + $0x98] sm:$0xff]
    %v110 = vld [vmem:[#allocation2 + $0xa0] sm:$0xff]
    %v111 = vld [vmem:[#allocation2 + $0xa8] sm:$0xff]
    %v112 = vld [vmem:[#allocation2 + $0xb0] sm:$0xff]
    %v113 = vld [vmem:[#allocation2 + $0xb8] sm:$0xff]
    %v114 = vld [vmem:[#allocation2 + $0xc0] sm:$0xff]
    %v115 = vld [vmem:[#allocation2 + $0xc8] sm:$0xff]
    %v116 = vld [vmem:[#allocation2 + $0xd0] sm:$0xff]
    %v117 = vld [vmem:[#allocation2 + $0xd8] sm:$0xff]
    %v118 = vld [vmem:[#allocation2 + $0xe0] sm:$0xff]
    %v119 = vld [vmem:[#allocation2 + $0xe8] sm:$0xff]
    %v120 = vld [vmem:[#allocation2 + $0xf0] sm:$0xff]
    %v121 = vld [vmem:[#allocation2 + $0xf8] sm:$0xff]
    %v122 = vld [vmem:[#allocation2 + $0x100] sm:$0xff]
    %v123 = vld [vmem:[#allocation2 + $0x108] sm:$0xff]
    %v124 = vld [vmem:[#allocation2 + $0x110] sm:$0xff]
    %v125 = vld [vmem:[#allocation2 + $0x118] sm:$0xff]
    %v126 = vld [vmem:[#allocation2 + $0x120] sm:$0xff]
    %v127 = vld [vmem:[#allocation2 + $0x128] sm:$0xff]
    %v128 = vld [vmem:[#allocation2 + $0x130] sm:$0xff]
    %v129 = vld [vmem:[#allocation2 + $0x138] sm:$0xff]
    %v130 = vld [vmem:[#allocation2 + $0x140] sm:$0xff]
    %v131 = vld [vmem:[#allocation2 + $0x148] sm:$0xff]
    %v132 = vld [vmem:[#allocation2 + $0x150] sm:$0xff]
    %v133 = vld [vmem:[#allocation2 + $0x158] sm:$0xff]
    %v134 = vld [vmem:[#allocation2 + $0x160] sm:$0xff]
    %v135 = vld [vmem:[#allocation2 + $0x168] sm:$0xff]
    %v136 = vld [vmem:[#allocation2 + $0x170] sm:$0xff]
    %v137 = vld [vmem:[#allocation2 + $0x178] sm:$0xff]
    %v138 = vld [vmem:[#allocation2 + $0x180] sm:$0xff]
    %v139 = vld [vmem:[#allocation2 + $0x188] sm:$0xff]
    %v140 = vld [vmem:[#allocation2 + $0x190] sm:$0xff]
    %v141 = vld [vmem:[#allocation2 + $0x198] sm:$0xff]
    %v142 = vld [vmem:[#allocation2 + $0x1a0] sm:$0xff]
    %v143 = vld [vmem:[#allocation2 + $0x1a8] sm:$0xff]
    %v144 = vld [vmem:[#allocation2 + $0x1b0] sm:$0xff]
    %v145 = vld [vmem:[#allocation2 + $0x1b8] sm:$0xff]
    %v146 = vld [vmem:[#allocation2 + $0x1c0] sm:$0xff]
    %v147 = vld [vmem:[#allocation2 + $0x1c8] sm:$0xff]
    %v148 = vld [vmem:[#allocation2 + $0x1d0] sm:$0xff]
    %v149 = vld [vmem:[#allocation2 + $0x1d8] sm:$0xff]
    %v150 = vld [vmem:[#allocation2 + $0x1e0] sm:$0xff]
    %v151 = vld [vmem:[#allocation2 + $0x1e8] sm:$0xff]
    %v152 = vld [vmem:[#allocation2 + $0x1f0] sm:$0xff]
    %v153 = vld [vmem:[#allocation2 + $0x1f8] sm:$0xff]
    %v154 = vunpack.c.l.bf16 %v90
    %v155 = vunpack.c.h.bf16 %v90
    %v156 = vunpack.c.l.bf16 %v91
    %v157 = vunpack.c.h.bf16 %v91
    %v158 = vunpack.c.l.bf16 %v92
    %v159 = vunpack.c.h.bf16 %v92
    %v160 = vunpack.c.l.bf16 %v93
    %v161 = vunpack.c.h.bf16 %v93
    %v162 = vunpack.c.l.bf16 %v94
    %v163 = vunpack.c.h.bf16 %v94
    %v164 = vunpack.c.l.bf16 %v95
    %v165 = vunpack.c.h.bf16 %v95
    %v166 = vunpack.c.l.bf16 %v96
    %v167 = vunpack.c.h.bf16 %v96
    %v168 = vunpack.c.l.bf16 %v97
    %v169 = vunpack.c.h.bf16 %v97
    %v170 = vunpack.c.l.bf16 %v98
    %v171 = vunpack.c.h.bf16 %v98
    %v172 = vunpack.c.l.bf16 %v99
    %v173 = vunpack.c.h.bf16 %v99
    %v174 = vunpack.c.l.bf16 %v100
    %v175 = vunpack.c.h.bf16 %v100
    %v176 = vunpack.c.l.bf16 %v101
    %v177 = vunpack.c.h.bf16 %v101
    %v178 = vunpack.c.l.bf16 %v102
    %v179 = vunpack.c.h.bf16 %v102
    %v180 = vunpack.c.l.bf16 %v103
    %v181 = vunpack.c.h.bf16 %v103
    %v182 = vunpack.c.l.bf16 %v104
    %v183 = vunpack.c.h.bf16 %v104
    %v184 = vunpack.c.l.bf16 %v105
    %v185 = vunpack.c.h.bf16 %v105
    %v186 = vunpack.c.l.bf16 %v106
    %v187 = vunpack.c.h.bf16 %v106
    %v188 = vunpack.c.l.bf16 %v107
    %v189 = vunpack.c.h.bf16 %v107
    %v190 = vunpack.c.l.bf16 %v108
    %v191 = vunpack.c.h.bf16 %v108
    %v192 = vunpack.c.l.bf16 %v109
    %v193 = vunpack.c.h.bf16 %v109
    %v194 = vunpack.c.l.bf16 %v110
    %v195 = vunpack.c.h.bf16 %v110
    %v196 = vunpack.c.l.bf16 %v111
    %v197 = vunpack.c.h.bf16 %v111
    %v198 = vunpack.c.l.bf16 %v112
    %v199 = vunpack.c.h.bf16 %v112
    %v200 = vunpack.c.l.bf16 %v113
    %v201 = vunpack.c.h.bf16 %v113
    %v202 = vunpack.c.l.bf16 %v114
    %v203 = vunpack.c.h.bf16 %v114
    %v204 = vunpack.c.l.bf16 %v115
    %v205 = vunpack.c.h.bf16 %v115
    %v206 = vunpack.c.l.bf16 %v116
    %v207 = vunpack.c.h.bf16 %v116
    %v208 = vunpack.c.l.bf16 %v117
    %v209 = vunpack.c.h.bf16 %v117
    %v210 = vunpack.c.l.bf16 %v118
    %v211 = vunpack.c.h.bf16 %v118
    %v212 = vunpack.c.l.bf16 %v119
    %v213 = vunpack.c.h.bf16 %v119
    %v214 = vunpack.c.l.bf16 %v120
    %v215 = vunpack.c.h.bf16 %v120
    %v216 = vunpack.c.l.bf16 %v121
    %v217 = vunpack.c.h.bf16 %v121
    %v218 = vunpack.c.l.bf16 %v122
    %v219 = vunpack.c.h.bf16 %v122
    %v220 = vunpack.c.l.bf16 %v123
    %v221 = vunpack.c.h.bf16 %v123
    %v222 = vunpack.c.l.bf16 %v124
    %v223 = vunpack.c.h.bf16 %v124
    %v224 = vunpack.c.l.bf16 %v125
    %v225 = vunpack.c.h.bf16 %v125
    %v226 = vunpack.c.l.bf16 %v126
    %v227 = vunpack.c.h.bf16 %v126
    %v228 = vunpack.c.l.bf16 %v127
    %v229 = vunpack.c.h.bf16 %v127
    %v230 = vunpack.c.l.bf16 %v128
    %v231 = vunpack.c.h.bf16 %v128
    %v232 = vunpack.c.l.bf16 %v129
    %v233 = vunpack.c.h.bf16 %v129
    %v234 = vunpack.c.l.bf16 %v130
    %v235 = vunpack.c.h.bf16 %v130
    %v236 = vunpack.c.l.bf16 %v131
    %v237 = vunpack.c.h.bf16 %v131
    %v238 = vunpack.c.l.bf16 %v132
    %v239 = vunpack.c.h.bf16 %v132
    %v240 = vunpack.c.l.bf16 %v133
    %v241 = vunpack.c.h.bf16 %v133
    %v242 = vunpack.c.l.bf16 %v134
    %v243 = vunpack.c.h.bf16 %v134
    %v244 = vunpack.c.l.bf16 %v135
    %v245 = vunpack.c.h.bf16 %v135
    %v246 = vunpack.c.l.bf16 %v136
    %v247 = vunpack.c.h.bf16 %v136
    %v248 = vunpack.c.l.bf16 %v137
    %v249 = vunpack.c.h.bf16 %v137
    %v250 = vunpack.c.l.bf16 %v138
    %v251 = vunpack.c.h.bf16 %v138
    %v252 = vunpack.c.l.bf16 %v139
    %v253 = vunpack.c.h.bf16 %v139
    %v254 = vunpack.c.l.bf16 %v140
    %v255 = vunpack.c.h.bf16 %v140
    %v256 = vunpack.c.l.bf16 %v141
    %v257 = vunpack.c.h.bf16 %v141
    %v258 = vunpack.c.l.bf16 %v142
    %v259 = vunpack.c.h.bf16 %v142
    %v260 = vunpack.c.l.bf16 %v143
    %v261 = vunpack.c.h.bf16 %v143
    %v262 = vunpack.c.l.bf16 %v144
    %v263 = vunpack.c.h.bf16 %v144
    %v264 = vunpack.c.l.bf16 %v145
    %v265 = vunpack.c.h.bf16 %v145
    %v266 = vunpack.c.l.bf16 %v146
    %v267 = vunpack.c.h.bf16 %v146
    %v268 = vunpack.c.l.bf16 %v147
    %v269 = vunpack.c.h.bf16 %v147
    %v270 = vunpack.c.l.bf16 %v148
    %v271 = vunpack.c.h.bf16 %v148
    %v272 = vunpack.c.l.bf16 %v149
    %v273 = vunpack.c.h.bf16 %v149
    %v274 = vunpack.c.l.bf16 %v150
    %v275 = vunpack.c.h.bf16 %v150
    %v276 = vunpack.c.l.bf16 %v151
    %v277 = vunpack.c.h.bf16 %v151
    %v278 = vunpack.c.l.bf16 %v152
    %v279 = vunpack.c.h.bf16 %v152
    %v280 = vunpack.c.l.bf16 %v153
    %v281 = vunpack.c.h.bf16 %v153
    %v282 = vadd.f32 %v154, %v155
    %283 = vadd.xlane.f32.xlu0 %v282
    %v284 = vpop.xlane.xlu0 %283
    %v285 = vadd.f32 %v156, %v157
    %286 = vadd.xlane.f32.xlu0 %v285
    %v287 = vpop.xlane.xlu0 %286
    %v288 = vadd.f32 %v158, %v159
    %289 = vadd.xlane.f32.xlu0 %v288
    %v290 = vpop.xlane.xlu0 %289
    %v291 = vadd.f32 %v160, %v161
    %292 = vadd.xlane.f32.xlu0 %v291
    %v293 = vpop.xlane.xlu0 %292
    %v294 = vadd.f32 %v162, %v163
    %295 = vadd.xlane.f32.xlu0 %v294
    %v296 = vpop.xlane.xlu0 %295
    %v297 = vadd.f32 %v164, %v165
    %298 = vadd.xlane.f32.xlu0 %v297
    %v299 = vpop.xlane.xlu0 %298
    %v300 = vadd.f32 %v166, %v167
    %301 = vadd.xlane.f32.xlu0 %v300
    %v302 = vpop.xlane.xlu0 %301
    %v303 = vadd.f32 %v168, %v169
    %304 = vadd.xlane.f32.xlu0 %v303
    %v305 = vpop.xlane.xlu0 %304
    %v306 = vadd.f32 %v170, %v171
    %307 = vadd.xlane.f32.xlu0 %v306
    %v308 = vpop.xlane.xlu0 %307
    %v309 = vadd.f32 %v172, %v173
    %310 = vadd.xlane.f32.xlu0 %v309
    %v311 = vpop.xlane.xlu0 %310
    %v312 = vadd.f32 %v174, %v175
    %313 = vadd.xlane.f32.xlu0 %v312
    %v314 = vpop.xlane.xlu0 %313
    %v315 = vadd.f32 %v176, %v177
    %316 = vadd.xlane.f32.xlu0 %v315
    %v317 = vpop.xlane.xlu0 %316
    %v318 = vadd.f32 %v178, %v179
    %319 = vadd.xlane.f32.xlu0 %v318
    %v320 = vpop.xlane.xlu0 %319
    %v321 = vadd.f32 %v180, %v181
    %322 = vadd.xlane.f32.xlu0 %v321
    %v323 = vpop.xlane.xlu0 %322
    %v324 = vadd.f32 %v182, %v183
    %325 = vadd.xlane.f32.xlu0 %v324
    %v326 = vpop.xlane.xlu0 %325
    %v327 = vadd.f32 %v184, %v185
    %328 = vadd.xlane.f32.xlu0 %v327
    %v329 = vpop.xlane.xlu0 %328
    %v330 = vadd.f32 %v186, %v187
    %331 = vadd.xlane.f32.xlu0 %v330
    %v332 = vpop.xlane.xlu0 %331
    %v333 = vadd.f32 %v188, %v189
    %334 = vadd.xlane.f32.xlu0 %v333
    %v335 = vpop.xlane.xlu0 %334
    %v336 = vadd.f32 %v190, %v191
    %337 = vadd.xlane.f32.xlu0 %v336
    %v338 = vpop.xlane.xlu0 %337
    %v339 = vadd.f32 %v192, %v193
    %340 = vadd.xlane.f32.xlu0 %v339
    %v341 = vpop.xlane.xlu0 %340
    %v342 = vadd.f32 %v194, %v195
    %343 = vadd.xlane.f32.xlu0 %v342
    %v344 = vpop.xlane.xlu0 %343
    %v345 = vadd.f32 %v196, %v197
    %346 = vadd.xlane.f32.xlu0 %v345
    %v347 = vpop.xlane.xlu0 %346
    %v348 = vadd.f32 %v198, %v199
    %349 = vadd.xlane.f32.xlu0 %v348
    %v350 = vpop.xlane.xlu0 %349
    %v351 = vadd.f32 %v200, %v201
    %352 = vadd.xlane.f32.xlu0 %v351
    %v353 = vpop.xlane.xlu0 %352
    %v354 = vadd.f32 %v202, %v203
    %355 = vadd.xlane.f32.xlu0 %v354
    %v356 = vpop.xlane.xlu0 %355
    %v357 = vadd.f32 %v204, %v205
    %358 = vadd.xlane.f32.xlu0 %v357
    %v359 = vpop.xlane.xlu0 %358
    %v360 = vadd.f32 %v206, %v207
    %361 = vadd.xlane.f32.xlu0 %v360
    %v362 = vpop.xlane.xlu0 %361
    %v363 = vadd.f32 %v208, %v209
    %364 = vadd.xlane.f32.xlu0 %v363
    %v365 = vpop.xlane.xlu0 %364
    %v366 = vadd.f32 %v210, %v211
    %367 = vadd.xlane.f32.xlu0 %v366
    %v368 = vpop.xlane.xlu0 %367
    %v369 = vadd.f32 %v212, %v213
    %370 = vadd.xlane.f32.xlu0 %v369
    %v371 = vpop.xlane.xlu0 %370
    %v372 = vadd.f32 %v214, %v215
    %373 = vadd.xlane.f32.xlu0 %v372
    %v374 = vpop.xlane.xlu0 %373
    %v375 = vadd.f32 %v216, %v217
    %376 = vadd.xlane.f32.xlu0 %v375
    %v377 = vpop.xlane.xlu0 %376
    %v378 = vadd.f32 %v218, %v219
    %379 = vadd.xlane.f32.xlu0 %v378
    %v380 = vpop.xlane.xlu0 %379
    %v381 = vadd.f32 %v220, %v221
    %382 = vadd.xlane.f32.xlu0 %v381
    %v383 = vpop.xlane.xlu0 %382
    %v384 = vadd.f32 %v222, %v223
    %385 = vadd.xlane.f32.xlu0 %v384
    %v386 = vpop.xlane.xlu0 %385
    %v387 = vadd.f32 %v224, %v225
    %388 = vadd.xlane.f32.xlu0 %v387
    %v389 = vpop.xlane.xlu0 %388
    %v390 = vadd.f32 %v226, %v227
    %391 = vadd.xlane.f32.xlu0 %v390
    %v392 = vpop.xlane.xlu0 %391
    %v393 = vadd.f32 %v228, %v229
    %394 = vadd.xlane.f32.xlu0 %v393
    %v395 = vpop.xlane.xlu0 %394
    %v396 = vadd.f32 %v230, %v231
    %397 = vadd.xlane.f32.xlu0 %v396
    %v398 = vpop.xlane.xlu0 %397
    %v399 = vadd.f32 %v232, %v233
    %400 = vadd.xlane.f32.xlu0 %v399
    %v401 = vpop.xlane.xlu0 %400
    %v402 = vadd.f32 %v234, %v235
    %403 = vadd.xlane.f32.xlu0 %v402
    %v404 = vpop.xlane.xlu0 %403
    %v405 = vadd.f32 %v236, %v237
    %406 = vadd.xlane.f32.xlu0 %v405
    %v407 = vpop.xlane.xlu0 %406
    %v408 = vadd.f32 %v238, %v239
    %409 = vadd.xlane.f32.xlu0 %v408
    %v410 = vpop.xlane.xlu0 %409
    %v411 = vadd.f32 %v240, %v241
    %412 = vadd.xlane.f32.xlu0 %v411
    %v413 = vpop.xlane.xlu0 %412
    %v414 = vadd.f32 %v242, %v243
    %415 = vadd.xlane.f32.xlu0 %v414
    %v416 = vpop.xlane.xlu0 %415
    %v417 = vadd.f32 %v244, %v245
    %418 = vadd.xlane.f32.xlu0 %v417
    %v419 = vpop.xlane.xlu0 %418
    %v420 = vadd.f32 %v246, %v247
    %421 = vadd.xlane.f32.xlu0 %v420
    %v422 = vpop.xlane.xlu0 %421
    %v423 = vadd.f32 %v248, %v249
    %424 = vadd.xlane.f32.xlu0 %v423
    %v425 = vpop.xlane.xlu0 %424
    %v426 = vadd.f32 %v250, %v251
    %427 = vadd.xlane.f32.xlu0 %v426
    %v428 = vpop.xlane.xlu0 %427
    %v429 = vadd.f32 %v252, %v253
    %430 = vadd.xlane.f32.xlu0 %v429
    %v431 = vpop.xlane.xlu0 %430
    %v432 = vadd.f32 %v254, %v255
    %433 = vadd.xlane.f32.xlu0 %v432
    %v434 = vpop.xlane.xlu0 %433
    %v435 = vadd.f32 %v256, %v257
    %436 = vadd.xlane.f32.xlu0 %v435
    %v437 = vpop.xlane.xlu0 %436
    %v438 = vadd.f32 %v258, %v259
    %439 = vadd.xlane.f32.xlu0 %v438
    %v440 = vpop.xlane.xlu0 %439
    %v441 = vadd.f32 %v260, %v261
    %442 = vadd.xlane.f32.xlu0 %v441
    %v443 = vpop.xlane.xlu0 %442
    %v444 = vadd.f32 %v262, %v263
    %445 = vadd.xlane.f32.xlu0 %v444
    %v446 = vpop.xlane.xlu0 %445
    %v447 = vadd.f32 %v264, %v265
    %448 = vadd.xlane.f32.xlu0 %v447
    %v449 = vpop.xlane.xlu0 %448
    %v450 = vadd.f32 %v266, %v267
    %451 = vadd.xlane.f32.xlu0 %v450
    %v452 = vpop.xlane.xlu0 %451
    %v453 = vadd.f32 %v268, %v269
    %454 = vadd.xlane.f32.xlu0 %v453
    %v455 = vpop.xlane.xlu0 %454
    %v456 = vadd.f32 %v270, %v271
    %457 = vadd.xlane.f32.xlu0 %v456
    %v458 = vpop.xlane.xlu0 %457
    %v459 = vadd.f32 %v272, %v273
    %460 = vadd.xlane.f32.xlu0 %v459
    %v461 = vpop.xlane.xlu0 %460
    %v462 = vadd.f32 %v274, %v275
    %463 = vadd.xlane.f32.xlu0 %v462
    %v464 = vpop.xlane.xlu0 %463
    %v465 = vadd.f32 %v276, %v277
    %466 = vadd.xlane.f32.xlu0 %v465
    %v467 = vpop.xlane.xlu0 %466
    %v468 = vadd.f32 %v278, %v279
    %469 = vadd.xlane.f32.xlu0 %v468
    %v470 = vpop.xlane.xlu0 %469
    %v471 = vadd.f32 %v280, %v281
    %472 = vadd.xlane.f32.xlu0 %v471
    %v473 = vpop.xlane.xlu0 %472
    %v474 = vpack.c.bf16 %v287, %v284
    %v475 = vpack.c.bf16 %v293, %v290
    %v476 = vpack.c.bf16 %v299, %v296
    %v477 = vpack.c.bf16 %v305, %v302
    %v478 = vpack.c.bf16 %v311, %v308
    %v479 = vpack.c.bf16 %v317, %v314
    %v480 = vpack.c.bf16 %v323, %v320
    %v481 = vpack.c.bf16 %v329, %v326
    %v482 = vpack.c.bf16 %v335, %v332
    %v483 = vpack.c.bf16 %v341, %v338
    %v484 = vpack.c.bf16 %v347, %v344
    %v485 = vpack.c.bf16 %v353, %v350
    %v486 = vpack.c.bf16 %v359, %v356
    %v487 = vpack.c.bf16 %v365, %v362
    %v488 = vpack.c.bf16 %v371, %v368
    %v489 = vpack.c.bf16 %v377, %v374
    %v490 = vpack.c.bf16 %v383, %v380
    %v491 = vpack.c.bf16 %v389, %v386
    %v492 = vpack.c.bf16 %v395, %v392
    %v493 = vpack.c.bf16 %v401, %v398
    %v494 = vpack.c.bf16 %v407, %v404
    %v495 = vpack.c.bf16 %v413, %v410
    %v496 = vpack.c.bf16 %v419, %v416
    %v497 = vpack.c.bf16 %v425, %v422
    %v498 = vpack.c.bf16 %v431, %v428
    %v499 = vpack.c.bf16 %v437, %v434
    %v500 = vpack.c.bf16 %v443, %v440
    %v501 = vpack.c.bf16 %v449, %v446
    %v502 = vpack.c.bf16 %v455, %v452
    %v503 = vpack.c.bf16 %v461, %v458
    %v504 = vpack.c.bf16 %v467, %v464
    %v505 = vpack.c.bf16 %v473, %v470
    %v506 = vld [vmem:[#allocation7] sm:$0xf]
    %v507 = vld [vmem:[#allocation7 + $0x4] sm:$0xf]
    %v508 = vld [vmem:[#allocation7 + $0x8] sm:$0xf]
    %v509 = vld [vmem:[#allocation7 + $0xc] sm:$0xf]
    %v510 = vld [vmem:[#allocation7 + $0x10] sm:$0xf]
    %v511 = vld [vmem:[#allocation7 + $0x14] sm:$0xf]
    %v512 = vld [vmem:[#allocation7 + $0x18] sm:$0xf]
    %v513 = vld [vmem:[#allocation7 + $0x1c] sm:$0xf]
    %v514 = vlaneseq
    %v515 = vshrl.u32 %v514, 7
    %v516 = vsub.s32 0, %v515
    %v517 = vrot.slane %v89, %v516
    %v550 = vunpack.c.l.b16 %v474
    %v551 = vunpack.c.h.b16 %v474
    %v552 = vunpack.c.l.b16 %v475
    %v553 = vunpack.c.h.b16 %v475
    %v554 = vunpack.c.l.b16 %v476
    %v555 = vunpack.c.h.b16 %v476
    %v556 = vunpack.c.l.b16 %v477
    %v557 = vunpack.c.h.b16 %v477
    %v558 = vunpack.c.l.b16 %v478
    %v559 = vunpack.c.h.b16 %v478
    %v560 = vunpack.c.l.b16 %v479
    %v561 = vunpack.c.h.b16 %v479
    %v562 = vunpack.c.l.b16 %v480
    %v563 = vunpack.c.h.b16 %v480
    %v564 = vunpack.c.l.b16 %v481
    %v565 = vunpack.c.h.b16 %v481
    %v566 = vunpack.c.l.b16 %v482
    %v567 = vunpack.c.h.b16 %v482
    %v568 = vunpack.c.l.b16 %v483
    %v569 = vunpack.c.h.b16 %v483
    %v570 = vunpack.c.l.b16 %v484
    %v571 = vunpack.c.h.b16 %v484
    %v572 = vunpack.c.l.b16 %v485
    %v573 = vunpack.c.h.b16 %v485
    %v574 = vunpack.c.l.b16 %v486
    %v575 = vunpack.c.h.b16 %v486
    %v576 = vunpack.c.l.b16 %v487
    %v577 = vunpack.c.h.b16 %v487
    %v578 = vunpack.c.l.b16 %v488
    %v579 = vunpack.c.h.b16 %v488
    %v580 = vunpack.c.l.b16 %v489
    %v581 = vunpack.c.h.b16 %v489
    %v582 = vunpack.c.l.b16 %v490
    %v583 = vunpack.c.h.b16 %v490
    %v584 = vunpack.c.l.b16 %v491
    %v585 = vunpack.c.h.b16 %v491
    %v586 = vunpack.c.l.b16 %v492
    %v587 = vunpack.c.h.b16 %v492
    %v588 = vunpack.c.l.b16 %v493
    %v589 = vunpack.c.h.b16 %v493
    %v590 = vunpack.c.l.b16 %v494
    %v591 = vunpack.c.h.b16 %v494
    %v592 = vunpack.c.l.b16 %v495
    %v593 = vunpack.c.h.b16 %v495
    %v594 = vunpack.c.l.b16 %v496
    %v595 = vunpack.c.h.b16 %v496
    %v596 = vunpack.c.l.b16 %v497
    %v597 = vunpack.c.h.b16 %v497
    %v598 = vunpack.c.l.b16 %v498
    %v599 = vunpack.c.h.b16 %v498
    %v600 = vunpack.c.l.b16 %v499
    %v601 = vunpack.c.h.b16 %v499
    %v602 = vunpack.c.l.b16 %v500
    %v603 = vunpack.c.h.b16 %v500
    %v604 = vunpack.c.l.b16 %v501
    %v605 = vunpack.c.h.b16 %v501
    %v606 = vunpack.c.l.b16 %v502
    %v607 = vunpack.c.h.b16 %v502
    %v608 = vunpack.c.l.b16 %v503
    %v609 = vunpack.c.h.b16 %v503
    %v610 = vunpack.c.l.b16 %v504
    %v611 = vunpack.c.h.b16 %v504
    %v612 = vunpack.c.l.b16 %v505
    %v613 = vunpack.c.h.b16 %v505
    %v614 = vlaneseq
    %v615 = vand.u32 %v614, 127
    %v616 = vlaneseq
    %v617 = vshrl.u32 %v616, 7
    %v618 = vsub.s32 %v615, %v617
    %v619 = vrot.slane %v550, %v618
    %v620 = vadd.s32 %v615, 4294967288
    %v621 = vlaneseq
    %v622 = vshrl.u32 %v621, 7
    %v623 = vsub.s32 %v620, %v622
    %v624 = vrot.slane %v551, %v623
    %vm625 = vcmask 130112
    %v626 = vsel %vm625, %v624, %v619
    %v627 = vadd.s32 %v615, 4294967280
    %v628 = vlaneseq
    %v629 = vshrl.u32 %v628, 7
    %v630 = vsub.s32 %v627, %v629
    %v631 = vrot.slane %v552, %v630
    %vm632 = vcmask 195712
    %v633 = vsel %vm632, %v631, %v626
    %v634 = vadd.s32 %v615, 4294967272
    %v635 = vlaneseq
    %v636 = vshrl.u32 %v635, 7
    %v637 = vsub.s32 %v634, %v636
    %v638 = vrot.slane %v553, %v637
    %vm639 = vcmask 261312
    %v640 = vsel %vm639, %v638, %v633
    %v641 = vadd.s32 %v615, 4294967264
    %v642 = vlaneseq
    %v643 = vshrl.u32 %v642, 7
    %v644 = vsub.s32 %v641, %v643
    %v645 = vrot.slane %v554, %v644
    %vm646 = vcmask 326912
    %v647 = vsel %vm646, %v645, %v640
    %v648 = vadd.s32 %v615, 4294967256
    %v649 = vlaneseq
    %v650 = vshrl.u32 %v649, 7
    %v651 = vsub.s32 %v648, %v650
    %v652 = vrot.slane %v555, %v651
    %vm653 = vcmask 392512
    %v654 = vsel %vm653, %v652, %v647
    %v655 = vadd.s32 %v615, 4294967248
    %v656 = vlaneseq
    %v657 = vshrl.u32 %v656, 7
    %v658 = vsub.s32 %v655, %v657
    %v659 = vrot.slane %v556, %v658
    %vm660 = vcmask 458112
    %v661 = vsel %vm660, %v659, %v654
    %v662 = vadd.s32 %v615, 4294967240
    %v663 = vlaneseq
    %v664 = vshrl.u32 %v663, 7
    %v665 = vsub.s32 %v662, %v664
    %v666 = vrot.slane %v557, %v665
    %vm667 = vcmask 523712
    %v668 = vsel %vm667, %v666, %v661
    %v669 = vlaneseq
    %v670 = vshrl.u32 %v669, 7
    %v671 = vsub.s32 %v615, %v670
    %v672 = vrot.slane %v558, %v671
    %v673 = vlaneseq
    %v674 = vshrl.u32 %v673, 7
    %v675 = vsub.s32 %v620, %v674
    %v676 = vrot.slane %v559, %v675
    %v677 = vsel %vm625, %v676, %v672
    %v678 = vlaneseq
    %v679 = vshrl.u32 %v678, 7
    %v680 = vsub.s32 %v627, %v679
    %v681 = vrot.slane %v560, %v680
    %v682 = vsel %vm632, %v681, %v677
    %v683 = vlaneseq
    %v684 = vshrl.u32 %v683, 7
    %v685 = vsub.s32 %v634, %v684
    %v686 = vrot.slane %v561, %v685
    %v687 = vsel %vm639, %v686, %v682
    %v688 = vlaneseq
    %v689 = vshrl.u32 %v688, 7
    %v690 = vsub.s32 %v641, %v689
    %v691 = vrot.slane %v562, %v690
    %v692 = vsel %vm646, %v691, %v687
    %v693 = vlaneseq
    %v694 = vshrl.u32 %v693, 7
    %v695 = vsub.s32 %v648, %v694
    %v696 = vrot.slane %v563, %v695
    %v697 = vsel %vm653, %v696, %v692
    %v698 = vlaneseq
    %v699 = vshrl.u32 %v698, 7
    %v700 = vsub.s32 %v655, %v699
    %v701 = vrot.slane %v564, %v700
    %v702 = vsel %vm660, %v701, %v697
    %v703 = vlaneseq
    %v704 = vshrl.u32 %v703, 7
    %v705 = vsub.s32 %v662, %v704
    %v706 = vrot.slane %v565, %v705
    %v707 = vsel %vm667, %v706, %v702
    %v708 = vlaneseq
    %v709 = vshrl.u32 %v708, 7
    %v710 = vsub.s32 %v615, %v709
    %v711 = vrot.slane %v566, %v710
    %v712 = vlaneseq
    %v713 = vshrl.u32 %v712, 7
    %v714 = vsub.s32 %v620, %v713
    %v715 = vrot.slane %v567, %v714
    %v716 = vsel %vm625, %v715, %v711
    %v717 = vlaneseq
    %v718 = vshrl.u32 %v717, 7
    %v719 = vsub.s32 %v627, %v718
    %v720 = vrot.slane %v568, %v719
    %v721 = vsel %vm632, %v720, %v716
    %v722 = vlaneseq
    %v723 = vshrl.u32 %v722, 7
    %v724 = vsub.s32 %v634, %v723
    %v725 = vrot.slane %v569, %v724
    %v726 = vsel %vm639, %v725, %v721
    %v727 = vlaneseq
    %v728 = vshrl.u32 %v727, 7
    %v729 = vsub.s32 %v641, %v728
    %v730 = vrot.slane %v570, %v729
    %v731 = vsel %vm646, %v730, %v726
    %v732 = vlaneseq
    %v733 = vshrl.u32 %v732, 7
    %v734 = vsub.s32 %v648, %v733
    %v735 = vrot.slane %v571, %v734
    %v736 = vsel %vm653, %v735, %v731
    %v737 = vlaneseq
    %v738 = vshrl.u32 %v737, 7
    %v739 = vsub.s32 %v655, %v738
    %v740 = vrot.slane %v572, %v739
    %v741 = vsel %vm660, %v740, %v736
    %v742 = vlaneseq
    %v743 = vshrl.u32 %v742, 7
    %v744 = vsub.s32 %v662, %v743
    %v745 = vrot.slane %v573, %v744
    %v746 = vsel %vm667, %v745, %v741
    %v747 = vlaneseq
    %v748 = vshrl.u32 %v747, 7
    %v749 = vsub.s32 %v615, %v748
    %v750 = vrot.slane %v574, %v749
    %v751 = vlaneseq
    %v752 = vshrl.u32 %v751, 7
    %v753 = vsub.s32 %v620, %v752
    %v754 = vrot.slane %v575, %v753
    %v755 = vsel %vm625, %v754, %v750
    %v756 = vlaneseq
    %v757 = vshrl.u32 %v756, 7
    %v758 = vsub.s32 %v627, %v757
    %v759 = vrot.slane %v576, %v758
    %v760 = vsel %vm632, %v759, %v755
    %v761 = vlaneseq
    %v762 = vshrl.u32 %v761, 7
    %v763 = vsub.s32 %v634, %v762
    %v764 = vrot.slane %v577, %v763
    %v765 = vsel %vm639, %v764, %v760
    %v766 = vlaneseq
    %v767 = vshrl.u32 %v766, 7
    %v768 = vsub.s32 %v641, %v767
    %v769 = vrot.slane %v578, %v768
    %v770 = vsel %vm646, %v769, %v765
    %v771 = vlaneseq
    %v772 = vshrl.u32 %v771, 7
    %v773 = vsub.s32 %v648, %v772
    %v774 = vrot.slane %v579, %v773
    %v775 = vsel %vm653, %v774, %v770
    %v776 = vlaneseq
    %v777 = vshrl.u32 %v776, 7
    %v778 = vsub.s32 %v655, %v777
    %v779 = vrot.slane %v580, %v778
    %v780 = vsel %vm660, %v779, %v775
    %v781 = vlaneseq
    %v782 = vshrl.u32 %v781, 7
    %v783 = vsub.s32 %v662, %v782
    %v784 = vrot.slane %v581, %v783
    %v785 = vsel %vm667, %v784, %v780
    %v786 = vlaneseq
    %v787 = vshrl.u32 %v786, 7
    %v788 = vsub.s32 %v615, %v787
    %v789 = vrot.slane %v582, %v788
    %v790 = vlaneseq
    %v791 = vshrl.u32 %v790, 7
    %v792 = vsub.s32 %v620, %v791
    %v793 = vrot.slane %v583, %v792
    %v794 = vsel %vm625, %v793, %v789
    %v795 = vlaneseq
    %v796 = vshrl.u32 %v795, 7
    %v797 = vsub.s32 %v627, %v796
    %v798 = vrot.slane %v584, %v797
    %v799 = vsel %vm632, %v798, %v794
    %v800 = vlaneseq
    %v801 = vshrl.u32 %v800, 7
    %v802 = vsub.s32 %v634, %v801
    %v803 = vrot.slane %v585, %v802
    %v804 = vsel %vm639, %v803, %v799
    %v805 = vlaneseq
    %v806 = vshrl.u32 %v805, 7
    %v807 = vsub.s32 %v641, %v806
    %v808 = vrot.slane %v586, %v807
    %v809 = vsel %vm646, %v808, %v804
    %v810 = vlaneseq
    %v811 = vshrl.u32 %v810, 7
    %v812 = vsub.s32 %v648, %v811
    %v813 = vrot.slane %v587, %v812
    %v814 = vsel %vm653, %v813, %v809
    %v815 = vlaneseq
    %v816 = vshrl.u32 %v815, 7
    %v817 = vsub.s32 %v655, %v816
    %v818 = vrot.slane %v588, %v817
    %v819 = vsel %vm660, %v818, %v814
    %v820 = vlaneseq
    %v821 = vshrl.u32 %v820, 7
    %v822 = vsub.s32 %v662, %v821
    %v823 = vrot.slane %v589, %v822
    %v824 = vsel %vm667, %v823, %v819
    %v825 = vlaneseq
    %v826 = vshrl.u32 %v825, 7
    %v827 = vsub.s32 %v615, %v826
    %v828 = vrot.slane %v590, %v827
    %v829 = vlaneseq
    %v830 = vshrl.u32 %v829, 7
    %v831 = vsub.s32 %v620, %v830
    %v832 = vrot.slane %v591, %v831
    %v833 = vsel %vm625, %v832, %v828
    %v834 = vlaneseq
    %v835 = vshrl.u32 %v834, 7
    %v836 = vsub.s32 %v627, %v835
    %v837 = vrot.slane %v592, %v836
    %v838 = vsel %vm632, %v837, %v833
    %v839 = vlaneseq
    %v840 = vshrl.u32 %v839, 7
    %v841 = vsub.s32 %v634, %v840
    %v842 = vrot.slane %v593, %v841
    %v843 = vsel %vm639, %v842, %v838
    %v844 = vlaneseq
    %v845 = vshrl.u32 %v844, 7
    %v846 = vsub.s32 %v641, %v845
    %v847 = vrot.slane %v594, %v846
    %v848 = vsel %vm646, %v847, %v843
    %v849 = vlaneseq
    %v850 = vshrl.u32 %v849, 7
    %v851 = vsub.s32 %v648, %v850
    %v852 = vrot.slane %v595, %v851
    %v853 = vsel %vm653, %v852, %v848
    %v854 = vlaneseq
    %v855 = vshrl.u32 %v854, 7
    %v856 = vsub.s32 %v655, %v855
    %v857 = vrot.slane %v596, %v856
    %v858 = vsel %vm660, %v857, %v853
    %v859 = vlaneseq
    %v860 = vshrl.u32 %v859, 7
    %v861 = vsub.s32 %v662, %v860
    %v862 = vrot.slane %v597, %v861
    %v863 = vsel %vm667, %v862, %v858
    %v864 = vlaneseq
    %v865 = vshrl.u32 %v864, 7
    %v866 = vsub.s32 %v615, %v865
    %v867 = vrot.slane %v598, %v866
    %v868 = vlaneseq
    %v869 = vshrl.u32 %v868, 7
    %v870 = vsub.s32 %v620, %v869
    %v871 = vrot.slane %v599, %v870
    %v872 = vsel %vm625, %v871, %v867
    %v873 = vlaneseq
    %v874 = vshrl.u32 %v873, 7
    %v875 = vsub.s32 %v627, %v874
    %v876 = vrot.slane %v600, %v875
    %v877 = vsel %vm632, %v876, %v872
    %v878 = vlaneseq
    %v879 = vshrl.u32 %v878, 7
    %v880 = vsub.s32 %v634, %v879
    %v881 = vrot.slane %v601, %v880
    %v882 = vsel %vm639, %v881, %v877
    %v883 = vlaneseq
    %v884 = vshrl.u32 %v883, 7
    %v885 = vsub.s32 %v641, %v884
    %v886 = vrot.slane %v602, %v885
    %v887 = vsel %vm646, %v886, %v882
    %v888 = vlaneseq
    %v889 = vshrl.u32 %v888, 7
    %v890 = vsub.s32 %v648, %v889
    %v891 = vrot.slane %v603, %v890
    %v892 = vsel %vm653, %v891, %v887
    %v893 = vlaneseq
    %v894 = vshrl.u32 %v893, 7
    %v895 = vsub.s32 %v655, %v894
    %v896 = vrot.slane %v604, %v895
    %v897 = vsel %vm660, %v896, %v892
    %v898 = vlaneseq
    %v899 = vshrl.u32 %v898, 7
    %v900 = vsub.s32 %v662, %v899
    %v901 = vrot.slane %v605, %v900
    %v902 = vsel %vm667, %v901, %v897
    %v903 = vlaneseq
    %v904 = vshrl.u32 %v903, 7
    %v905 = vsub.s32 %v615, %v904
    %v906 = vrot.slane %v606, %v905
    %v907 = vlaneseq
    %v908 = vshrl.u32 %v907, 7
    %v909 = vsub.s32 %v620, %v908
    %v910 = vrot.slane %v607, %v909
    %v911 = vsel %vm625, %v910, %v906
    %v912 = vlaneseq
    %v913 = vshrl.u32 %v912, 7
    %v914 = vsub.s32 %v627, %v913
    %v915 = vrot.slane %v608, %v914
    %v916 = vsel %vm632, %v915, %v911
    %v917 = vlaneseq
    %v918 = vshrl.u32 %v917, 7
    %v919 = vsub.s32 %v634, %v918
    %v920 = vrot.slane %v609, %v919
    %v921 = vsel %vm639, %v920, %v916
    %v922 = vlaneseq
    %v923 = vshrl.u32 %v922, 7
    %v924 = vsub.s32 %v641, %v923
    %v925 = vrot.slane %v610, %v924
    %v926 = vsel %vm646, %v925, %v921
    %v927 = vlaneseq
    %v928 = vshrl.u32 %v927, 7
    %v929 = vsub.s32 %v648, %v928
    %v930 = vrot.slane %v611, %v929
    %v931 = vsel %vm653, %v930, %v926
    %v932 = vlaneseq
    %v933 = vshrl.u32 %v932, 7
    %v934 = vsub.s32 %v655, %v933
    %v935 = vrot.slane %v612, %v934
    %v936 = vsel %vm660, %v935, %v931
    %v937 = vlaneseq
    %v938 = vshrl.u32 %v937, 7
    %v939 = vsub.s32 %v662, %v938
    %v940 = vrot.slane %v613, %v939
    %v941 = vsel %vm667, %v940, %v936
    %vm942 = vcmask 1041409
    %v943 = vsel %vm942, %v707, %v668
    %vm944 = vcmask 1042434
    %v945 = vsel %vm944, %v746, %v943
    %vm946 = vcmask 1043459
    %v947 = vsel %vm946, %v785, %v945
    %vm948 = vcmask 1044484
    %v949 = vsel %vm948, %v824, %v947
    %vm950 = vcmask 1045509
    %v951 = vsel %vm950, %v863, %v949
    %vm952 = vcmask 1046534
    %v953 = vsel %vm952, %v902, %v951
    %vm954 = vcmask 1047559
    %v955 = vsel %vm954, %v941, %v953
    %v956 = vpack.c.b16 %v955, %v955
    %v965 = vunpack.c.l.b16 %v506
    %v966 = vunpack.c.l.b16 %v507
    %v967 = vunpack.c.l.b16 %v508
    %v968 = vunpack.c.l.b16 %v509
    %v969 = vunpack.c.l.b16 %v510
    %v970 = vunpack.c.l.b16 %v511
    %v971 = vunpack.c.l.b16 %v512
    %v972 = vunpack.c.l.b16 %v513
    %v973 = vpack.c.b16 %v966, %v965
    %v974 = vpack.c.b16 %v968, %v967
    %v975 = vpack.c.b16 %v970, %v969
    %v976 = vpack.c.b16 %v972, %v971
    %vm981 = vcmask 523264
    %v983 = vsel %vm981, %v956, 0
    %985 = vmatprep.subr.bf16.mxu0 0
    %986 = vmatpush1.bf16.msra.mxu0 0
    %987 = vmatprep.subr.bf16.mxu0 0
    %988 = vmatpush1.bf16.msra.mxu0 0
    %989 = vmatprep.subr.bf16.mxu0 0
    %990 = vmatpush1.bf16.msra.mxu0 0
    %991 = vmatprep.subr.bf16.mxu0 0
    %992 = vmatpush1.bf16.msra.mxu0 0
    %993 = vmatprep.subr.bf16.mxu0 0
    %994 = vmatpush1.bf16.msra.mxu0 %v976
    %995 = vmatprep.subr.bf16.mxu0 0
    %996 = vmatpush1.bf16.msra.mxu0 %v975
    %997 = vmatprep.subr.bf16.mxu0 0
    %998 = vmatpush1.bf16.msra.mxu0 %v974
    %999 = vmatprep.subr.bf16.mxu0 0
    %1000 = vmatpush1.bf16.msra.mxu0 %v973
    %1001 = vmatprep.subr.bf16.mxu0 0
    %1002 = vmatpush2.bf16.msra.mxu0 0
    %1003 = vmatprep.subr.bf16.mxu0 0
    %1004 = vmatpush2.bf16.msra.mxu0 0
    %1005 = vmatprep.subr.bf16.mxu0 0
    %1006 = vmatpush2.bf16.msra.mxu0 0
    %1007 = vmatprep.subr.bf16.mxu0 0
    %1008 = vmatpush2.bf16.msra.mxu0 0
    %1009 = vmatprep.subr.bf16.mxu0 0
    %1010 = vmatpush2.bf16.msra.mxu0 0
    %1011 = vmatprep.subr.bf16.mxu0 0
    %1012 = vmatpush2.bf16.msra.mxu0 0
    %1013 = vmatprep.subr.bf16.mxu0 0
    %1014 = vmatpush2.bf16.msra.mxu0 0
    %1015 = vmatprep.subr.bf16.mxu0 0
    %1016 = vmatpush2.bf16.msra.mxu0 0
    %1017 = vmatprep.mubr.bf16.mxu0 0
    %1018 = vmatmul.mubr.bf16.gmra.mxu0 %v983
    %v1019 = vpop.f32.mrf.mxu0
    %v1020 = vadd.f32 %v517, %v1019
    %v1021 = vpop.f32.mrf.mxu0
    %v1022 = vpop.f32.mrf.mxu0
    %v1023 = vpop.f32.mrf.mxu0
    %1024 = vdwg.mxu0
    %v1025 = vtanh.pop %v1020
    %vm1026 = vcmp.lt.s32.totalorder %v615, 32
    %v1027 = vsel %vm1026, 1, 0
    %v1028 = vcvt.s32.f32 %v1027
    %v1029 = vmul.f32 %v1025, %v1028
    %1030 = vadd.xlane.f32.xlu0 %v1029
    %v1031 = vpop.xlane.xlu0 %1030
    %v1032 = vmul.f32 %v1031, 0.03125
    %v1033 = vsub.f32 %v1029, %v1032
    %v1034 = vmul.f32 %v1033, %v1028
    %v1035 = vmul.f32 %v1034, %v1034
    %1036 = vadd.xlane.f32.xlu0 %v1035
    %v1037 = vpop.xlane.xlu0 %1036
    %v1038 = vmul.f32 %v1037, 0.03125
    %v1039 = vadd.f32 %v1038, 1e-05
    %v1040 = vrsqrt.pop %v1039
    %v1041 = vmul.f32 %v1034, %v1040
    %v1042 = vlaneseq
    %v1043 = vshrl.u32 %v1042, 7
    %v1044 = vsub.s32 1, %v1043
    %v1045 = vrot.slane %v89, %v1044
    %v1046 = vmul.f32 %v1041, %v1045
    %v1047 = vlaneseq
    %v1048 = vshrl.u32 %v1047, 7
    %v1049 = vsub.s32 2, %v1048
    %v1050 = vrot.slane %v89, %v1049
    %v1051 = vadd.f32 %v1046, %v1050
    %1052 = vst [vmem:[#allocation11] sm:$0xff] %v1051
    %v1053 = vld [vmem:[#allocation5] sm:$0xff]
    %v1054 = vpack.c.bf16 %v1053, %v1053
    %v1055 = vld [vmem:[#allocation8] sm:$0xf]
    %v1056 = vld [vmem:[#allocation8 + $0x4] sm:$0xf]
    %v1057 = vld [vmem:[#allocation8 + $0x8] sm:$0xf]
    %v1058 = vld [vmem:[#allocation8 + $0xc] sm:$0xf]
    %v1059 = vld [vmem:[#allocation8 + $0x10] sm:$0xf]
    %v1060 = vlaneseq
    %v1061 = vshrl.u32 %v1060, 7
    %v1062 = vsub.s32 3, %v1061
    %v1063 = vrot.slane %v89, %v1062
    %v1069 = vunpack.c.l.b16 %v1055
    %v1070 = vunpack.c.l.b16 %v1056
    %v1071 = vunpack.c.l.b16 %v1057
    %v1072 = vunpack.c.l.b16 %v1058
    %v1073 = vunpack.c.l.b16 %v1059
    %v1074 = vpack.c.b16 %v1070, %v1069
    %v1075 = vpack.c.b16 %v1072, %v1071
    %v1076 = vpack.c.b16 %v1073, %v1073
    %vm1079 = vcmask 326656
    %v1081 = vsel %vm1079, %v1054, 0
    %vm1083 = vcmask 1043456
    %v1085 = vsel %vm1083, %v1076, 0
    %1087 = vmatprep.subr.bf16.mxu0 0
    %1088 = vmatpush1.bf16.msra.mxu0 0
    %1089 = vmatprep.subr.bf16.mxu0 0
    %1090 = vmatpush1.bf16.msra.mxu0 0
    %1091 = vmatprep.subr.bf16.mxu0 0
    %1092 = vmatpush1.bf16.msra.mxu0 0
    %1093 = vmatprep.subr.bf16.mxu0 0
    %1094 = vmatpush1.bf16.msra.mxu0 0
    %1095 = vmatprep.subr.bf16.mxu0 0
    %1096 = vmatpush1.bf16.msra.mxu0 0
    %1097 = vmatprep.subr.bf16.mxu0 0
    %1098 = vmatpush1.bf16.msra.mxu0 %v1085
    %1099 = vmatprep.subr.bf16.mxu0 0
    %1100 = vmatpush1.bf16.msra.mxu0 %v1075
    %1101 = vmatprep.subr.bf16.mxu0 0
    %1102 = vmatpush1.bf16.msra.mxu0 %v1074
    %1103 = vmatprep.subr.bf16.mxu0 0
    %1104 = vmatpush2.bf16.msra.mxu0 0
    %1105 = vmatprep.subr.bf16.mxu0 0
    %1106 = vmatpush2.bf16.msra.mxu0 0
    %1107 = vmatprep.subr.bf16.mxu0 0
    %1108 = vmatpush2.bf16.msra.mxu0 0
    %1109 = vmatprep.subr.bf16.mxu0 0
    %1110 = vmatpush2.bf16.msra.mxu0 0
    %1111 = vmatprep.subr.bf16.mxu0 0
    %1112 = vmatpush2.bf16.msra.mxu0 0
    %1113 = vmatprep.subr.bf16.mxu0 0
    %1114 = vmatpush2.bf16.msra.mxu0 0
    %1115 = vmatprep.subr.bf16.mxu0 0
    %1116 = vmatpush2.bf16.msra.mxu0 0
    %1117 = vmatprep.subr.bf16.mxu0 0
    %1118 = vmatpush2.bf16.msra.mxu0 0
    %1119 = vmatprep.mubr.bf16.mxu0 0
    %1120 = vmatmul.mubr.bf16.gmra.mxu0 %v1081
    %v1121 = vpop.f32.mrf.mxu0
    %v1122 = vadd.f32 %v1063, %v1121
    %v1123 = vpop.f32.mrf.mxu0
    %v1124 = vpop.f32.mrf.mxu0
    %v1125 = vpop.f32.mrf.mxu0
    %1126 = vdwg.mxu0
    %v1127 = vtanh.pop %v1122
    %v1128 = vmul.f32 %v1127, %v1028
    %1129 = vadd.xlane.f32.xlu0 %v1128
    %v1130 = vpop.xlane.xlu0 %1129
    %v1131 = vmul.f32 %v1130, 0.03125
    %v1132 = vsub.f32 %v1128, %v1131
    %v1133 = vmul.f32 %v1132, %v1028
    %v1134 = vmul.f32 %v1133, %v1133
    %1135 = vadd.xlane.f32.xlu0 %v1134
    %v1136 = vpop.xlane.xlu0 %1135
    %v1137 = vmul.f32 %v1136, 0.03125
    %v1138 = vadd.f32 %v1137, 1e-05
    %v1139 = vrsqrt.pop %v1138
    %v1140 = vmul.f32 %v1133, %v1139
    %v1141 = vlaneseq
    %v1142 = vshrl.u32 %v1141, 7
    %v1143 = vsub.s32 4, %v1142
    %v1144 = vrot.slane %v89, %v1143
    %v1145 = vmul.f32 %v1140, %v1144
    %v1146 = vlaneseq
    %v1147 = vshrl.u32 %v1146, 7
    %v1148 = vsub.s32 5, %v1147
    %v1149 = vrot.slane %v89, %v1148
    %v1150 = vadd.f32 %v1145, %v1149
    %1151 = vst [vmem:[#allocation12] sm:$0xff] %v1150
    // Predicated region
    $region42: #{tpu_custom_call.1} parent=1 // pred_check
      _
    $region43: #{tpu_custom_call.1} parent=1 // pred_check_branch
      %1153 = sbr.rel (0) target = $region45
    $region44: #{tpu_custom_call.1} parent=1 // pred_region
      %s1155 = ssub.s32 128, 128
      %1156 = vsyncadd [#allocation4], %s1155
      %s1158 = sshll.u32 [#allocation11], 4
      %s1159 = int_to_ptr.vmem [resolvable:$true] %s1158
      %1161 = dma.vmem_to_hbm [thread:$0]  %s1159, 128, %s5, [#allocation4]
    $region45: #{tpu_custom_call.1} parent=1 // pred_fallthru
      _
    // Predicated region
    $region46: #{tpu_custom_call.1} parent=1 // pred_check
      _
    $region47: #{tpu_custom_call.1} parent=1 // pred_check_branch
      %1163 = sbr.rel (0) target = $region49
    $region48: #{tpu_custom_call.1} parent=1 // pred_region
      %s1165 = ssub.s32 128, 128
      %1166 = vsyncadd [#allocation13], %s1165
      %s1168 = sshll.u32 [#allocation12], 4
      %s1169 = int_to_ptr.vmem [resolvable:$true] %s1168
      %1171 = dma.vmem_to_hbm [thread:$0]  %s1169, 128, %s6, [#allocation13]
    $region49: #{tpu_custom_call.1} parent=1 // pred_fallthru
      _
    // Predicated region
    $region50: #{tpu_custom_call.1} parent=1 // pred_check
      _
    $region51: #{tpu_custom_call.1} parent=1 // pred_check_branch
      %1173 = sbr.rel (0) target = $region53
    $region52: #{tpu_custom_call.1} parent=1 // pred_region
      %1174 = dma.done [#allocation4], 128
    $region53: #{tpu_custom_call.1} parent=1 // pred_fallthru
      _
    // Predicated region
    $region54: #{tpu_custom_call.1} parent=1 // pred_check
      _
    $region55: #{tpu_custom_call.1} parent=1 // pred_check_branch
      %1176 = sbr.rel (0) target = $region57
    $region56: #{tpu_custom_call.1} parent=1 // pred_region
      %1177 = dma.done [#allocation13], 128
    $region57: #{tpu_custom_call.1} parent=1 // pred_fallthru
      _
    %1178 = vsyncpa [#allocation3], 1
    %1179 = vsyncpa [#allocation6], 1
    %1180 = vsyncpa [#allocation9], 1
    %1181 = vsyncpa [#allocation4], 1
    %1182 = vsyncpa [#allocation13], 1

// kernel: tpu_custom_call.1
$region0: #{tpu_custom_call.1}
  #allocation0 [shape = 'u32[]', space=smem, size = 0x4, offset = 0x4, fixed_abs, tag = 'smem constant byte address 0x4 - core index']
  #allocation1 [shape = 'u32[144,128]{1,0:T(1,128)}', space=vmem, size = 0x12000, scoped, tag = 'internal scratch']
  %s0 = inlined_call_operand.hbm [shape: bf16[8,64,256], index: 0, kind: input, shape index: {}]
  %s1 = inlined_call_operand.hbm [shape: f32[8,40], index: 1, kind: input, shape index: {}]
  %s2 = inlined_call_operand.hbm [shape: bf16[64,128], index: 2, kind: input, shape index: {}]
  %s3 = inlined_call_operand.hbm [shape: bf16[40,128], index: 3, kind: input, shape index: {}]
  %s4 = inlined_call_operand.hbm [shape: f32[8,128], index: 4, kind: input, shape index: {}]
  %s5 = inlined_call_operand.hbm [shape: f32[8,128], index: 5, kind: output, shape index: {0}]
  %s6 = inlined_call_operand.hbm [shape: f32[8,128], index: 6, kind: output, shape index: {1}]
  %7 = xla_tuple %s5, %s6
  %s8 = sld [smem:[#allocation0]]
  $region58: #{tpu_custom_call.1} parent=0
    _
  %s10 = ssub.s32 1, %s8
  %s11 = scalar_select 0, %s10, %s8
  $region1: #{tpu_custom_call.1} parent=0
    #allocation2 [shape = 'u8[262144]{0}', space=vmem, size = 0x40000, scoped, tag = 'input window, operand 0, single buffered']
    #allocation3 [shape = 's32[1]{0}', space=sflag, size = 0x4, scoped, tag = 'scoped memory for tpu_custom_call.1']
    #allocation4 [shape = 's32[1]{0}', space=sflag, size = 0x4, scoped, tag = 'scoped memory for tpu_custom_call.1']
    #allocation5 [shape = 'u8[4096]{0}', space=vmem, size = 0x1000, scoped, tag = 'input window, operand 1, single buffered']
    #allocation6 [shape = 's32[1]{0}', space=sflag, size = 0x4, scoped, tag = 'scoped memory for tpu_custom_call.1']
    #allocation7 [shape = 'u8[16384]{0}', space=vmem, size = 0x4000, scoped, tag = 'input window, operand 2, single buffered']
    #allocation8 [shape = 'u8[10240]{0}', space=vmem, size = 0x2800, scoped, tag = 'input window, operand 3, single buffered']
    #allocation9 [shape = 's32[1]{0}', space=sflag, size = 0x4, scoped, tag = 'scoped memory for tpu_custom_call.1']
    #allocation10 [shape = 'u8[4096]{0}', space=vmem, size = 0x1000, scoped, tag = 'input window, operand 4, single buffered']
    #allocation11 [shape = 'u8[4096]{0}', space=vmem, size = 0x1000, scoped, tag = 'output window, operand 0, single buffered']
    #allocation12 [shape = 'u8[4096]{0}', space=vmem, size = 0x1000, scoped, tag = 'output window, operand 1, single buffered']
    #allocation13 [shape = 's32[1]{0}', space=sflag, size = 0x4, scoped, tag = 'scoped memory for tpu_custom_call.1']
    %12 = vsyncpa [#allocation3], 0
    %13 = vsyncpa [#allocation6], 0
    %14 = vsyncpa [#allocation9], 0
    %15 = vsyncpa [#allocation4], 0
    %16 = vsyncpa [#allocation13], 0
    // Predicated region
    $region2: #{tpu_custom_call.1} parent=1 // pred_check
      _
    $region3: #{tpu_custom_call.1} parent=1 // pred_check_branch
      %18 = sbr.rel (0) target = $region5
    $region4: #{tpu_custom_call.1} parent=1 // pred_region
      %s20 = ssub.s32 8192, 8192
      %21 = vsyncadd [#allocation3], %s20
      %s22 = sshll.u32 [#allocation2], 4
      %s23 = int_to_ptr.vmem [resolvable:$true] %s22
      %28 = dma.hbm_to_vmem [thread:$0]  %s0, 8192, %s23, [#allocation3], 128, 128, 8
    $region5: #{tpu_custom_call.1} parent=1 // pred_fallthru
      _
    // Predicated region
    $region6: #{tpu_custom_call.1} parent=1 // pred_check
      _
    $region7: #{tpu_custom_call.1} parent=1 // pred_check_branch
      %30 = sbr.rel (0) target = $region9
    $region8: #{tpu_custom_call.1} parent=1 // pred_region
      %s32 = ssub.s32 128, 128
      %33 = vsyncadd [#allocation6], %s32
      %s35 = sshll.u32 [#allocation5], 4
      %s36 = int_to_ptr.vmem [resolvable:$true] %s35
      %38 = dma.hbm_to_vmem [thread:$0]  %s1, 128, %s36, [#allocation6]
    $region9: #{tpu_custom_call.1} parent=1 // pred_fallthru
      _
    // Predicated region
    $region10: #{tpu_custom_call.1} parent=1 // pred_check
      _
    $region11: #{tpu_custom_call.1} parent=1 // pred_check_branch
      %40 = sbr.rel (0) target = $region13
    $region12: #{tpu_custom_call.1} parent=1 // pred_region
      %s42 = ssub.s32 512, 512
      %43 = vsyncadd [#allocation6], %s42
      %s44 = sshll.u32 [#allocation7], 4
      %s45 = int_to_ptr.vmem [resolvable:$true] %s44
      %50 = dma.hbm_to_vmem [thread:$0]  %s2, 512, %s45, [#allocation6], 64, 64, 4
    $region13: #{tpu_custom_call.1} parent=1 // pred_fallthru
      _
    // Predicated region
    $region14: #{tpu_custom_call.1} parent=1 // pred_check
      _
    $region15: #{tpu_custom_call.1} parent=1 // pred_check_branch
      %52 = sbr.rel (0) target = $region17
    $region16: #{tpu_custom_call.1} parent=1 // pred_region
      %s54 = ssub.s32 320, 320
      %55 = vsyncadd [#allocation9], %s54
      %s56 = sshll.u32 [#allocation8], 4
      %s57 = int_to_ptr.vmem [resolvable:$true] %s56
      %62 = dma.hbm_to_vmem [thread:$0]  %s3, 320, %s57, [#allocation9], 64, 64, 4
    $region17: #{tpu_custom_call.1} parent=1 // pred_fallthru
      _
    // Predicated region
    $region18: #{tpu_custom_call.1} parent=1 // pred_check
      _
    $region19: #{tpu_custom_call.1} parent=1 // pred_check_branch
      %64 = sbr.rel (0) target = $region21
    $region20: #{tpu_custom_call.1} parent=1 // pred_region
      %s66 = ssub.s32 128, 128
      %67 = vsyncadd [#allocation9], %s66
      %s69 = sshll.u32 [#allocation10], 4
      %s70 = int_to_ptr.vmem [resolvable:$true] %s69
      %72 = dma.hbm_to_vmem [thread:$0]  %s4, 128, %s70, [#allocation9]
    $region21: #{tpu_custom_call.1} parent=1 // pred_fallthru
      _
    // Predicated region
    $region22: #{tpu_custom_call.1} parent=1 // pred_check
      _
    $region23: #{tpu_custom_call.1} parent=1 // pred_check_branch
      %74 = sbr.rel (0) target = $region25
    $region24: #{tpu_custom_call.1} parent=1 // pred_region
      %75 = dma.done [#allocation3], 8192
    $region25: #{tpu_custom_call.1} parent=1 // pred_fallthru
      _
    // Predicated region
    $region26: #{tpu_custom_call.1} parent=1 // pred_check
      _
    $region27: #{tpu_custom_call.1} parent=1 // pred_check_branch
      %77 = sbr.rel (0) target = $region29
    $region28: #{tpu_custom_call.1} parent=1 // pred_region
      %78 = dma.done [#allocation6], 128
    $region29: #{tpu_custom_call.1} parent=1 // pred_fallthru
      _
    // Predicated region
    $region30: #{tpu_custom_call.1} parent=1 // pred_check
      _
    $region31: #{tpu_custom_call.1} parent=1 // pred_check_branch
      %80 = sbr.rel (0) target = $region33
    $region32: #{tpu_custom_call.1} parent=1 // pred_region
      %81 = dma.done [#allocation6], 512
    $region33: #{tpu_custom_call.1} parent=1 // pred_fallthru
      _
    // Predicated region
    $region34: #{tpu_custom_call.1} parent=1 // pred_check
      _
    $region35: #{tpu_custom_call.1} parent=1 // pred_check_branch
      %83 = sbr.rel (0) target = $region37
    $region36: #{tpu_custom_call.1} parent=1 // pred_region
      %84 = dma.done [#allocation9], 320
    $region37: #{tpu_custom_call.1} parent=1 // pred_fallthru
      _
    // Predicated region
    $region38: #{tpu_custom_call.1} parent=1 // pred_check
      _
    $region39: #{tpu_custom_call.1} parent=1 // pred_check_branch
      %86 = sbr.rel (0) target = $region41
    $region40: #{tpu_custom_call.1} parent=1 // pred_region
      %87 = dma.done [#allocation9], 128
    $region41: #{tpu_custom_call.1} parent=1 // pred_fallthru
      _
    %v89 = vld [vmem:[#allocation10] sm:$0xff]
    %v90 = vld [vmem:[#allocation2] sm:$0xff]
    %v91 = vld [vmem:[#allocation2 + $0x8] sm:$0xff]
    %v92 = vld [vmem:[#allocation2 + $0x10] sm:$0xff]
    %v93 = vld [vmem:[#allocation2 + $0x18] sm:$0xff]
    %v94 = vld [vmem:[#allocation2 + $0x20] sm:$0xff]
    %v95 = vld [vmem:[#allocation2 + $0x28] sm:$0xff]
    %v96 = vld [vmem:[#allocation2 + $0x30] sm:$0xff]
    %v97 = vld [vmem:[#allocation2 + $0x38] sm:$0xff]
    %v98 = vld [vmem:[#allocation2 + $0x40] sm:$0xff]
    %v99 = vld [vmem:[#allocation2 + $0x48] sm:$0xff]
    %v100 = vld [vmem:[#allocation2 + $0x50] sm:$0xff]
    %v101 = vld [vmem:[#allocation2 + $0x58] sm:$0xff]
    %v102 = vld [vmem:[#allocation2 + $0x60] sm:$0xff]
    %v103 = vld [vmem:[#allocation2 + $0x68] sm:$0xff]
    %v104 = vld [vmem:[#allocation2 + $0x70] sm:$0xff]
    %v105 = vld [vmem:[#allocation2 + $0x78] sm:$0xff]
    %v106 = vld [vmem:[#allocation2 + $0x80] sm:$0xff]
    %v107 = vld [vmem:[#allocation2 + $0x88] sm:$0xff]
    %v108 = vld [vmem:[#allocation2 + $0x90] sm:$0xff]
    %v109 = vld [vmem:[#allocation2 + $0x98] sm:$0xff]
    %v110 = vld [vmem:[#allocation2 + $0xa0] sm:$0xff]
    %v111 = vld [vmem:[#allocation2 + $0xa8] sm:$0xff]
    %v112 = vld [vmem:[#allocation2 + $0xb0] sm:$0xff]
    %v113 = vld [vmem:[#allocation2 + $0xb8] sm:$0xff]
    %v114 = vld [vmem:[#allocation2 + $0xc0] sm:$0xff]
    %v115 = vld [vmem:[#allocation2 + $0xc8] sm:$0xff]
    %v116 = vld [vmem:[#allocation2 + $0xd0] sm:$0xff]
    %v117 = vld [vmem:[#allocation2 + $0xd8] sm:$0xff]
    %v118 = vld [vmem:[#allocation2 + $0xe0] sm:$0xff]
    %v119 = vld [vmem:[#allocation2 + $0xe8] sm:$0xff]
    %v120 = vld [vmem:[#allocation2 + $0xf0] sm:$0xff]
    %v121 = vld [vmem:[#allocation2 + $0xf8] sm:$0xff]
    %v122 = vld [vmem:[#allocation2 + $0x100] sm:$0xff]
    %v123 = vld [vmem:[#allocation2 + $0x108] sm:$0xff]
    %v124 = vld [vmem:[#allocation2 + $0x110] sm:$0xff]
    %v125 = vld [vmem:[#allocation2 + $0x118] sm:$0xff]
    %v126 = vld [vmem:[#allocation2 + $0x120] sm:$0xff]
    %v127 = vld [vmem:[#allocation2 + $0x128] sm:$0xff]
    %v128 = vld [vmem:[#allocation2 + $0x130] sm:$0xff]
    %v129 = vld [vmem:[#allocation2 + $0x138] sm:$0xff]
    %v130 = vld [vmem:[#allocation2 + $0x140] sm:$0xff]
    %v131 = vld [vmem:[#allocation2 + $0x148] sm:$0xff]
    %v132 = vld [vmem:[#allocation2 + $0x150] sm:$0xff]
    %v133 = vld [vmem:[#allocation2 + $0x158] sm:$0xff]
    %v134 = vld [vmem:[#allocation2 + $0x160] sm:$0xff]
    %v135 = vld [vmem:[#allocation2 + $0x168] sm:$0xff]
    %v136 = vld [vmem:[#allocation2 + $0x170] sm:$0xff]
    %v137 = vld [vmem:[#allocation2 + $0x178] sm:$0xff]
    %v138 = vld [vmem:[#allocation2 + $0x180] sm:$0xff]
    %v139 = vld [vmem:[#allocation2 + $0x188] sm:$0xff]
    %v140 = vld [vmem:[#allocation2 + $0x190] sm:$0xff]
    %v141 = vld [vmem:[#allocation2 + $0x198] sm:$0xff]
    %v142 = vld [vmem:[#allocation2 + $0x1a0] sm:$0xff]
    %v143 = vld [vmem:[#allocation2 + $0x1a8] sm:$0xff]
    %v144 = vld [vmem:[#allocation2 + $0x1b0] sm:$0xff]
    %v145 = vld [vmem:[#allocation2 + $0x1b8] sm:$0xff]
    %v146 = vld [vmem:[#allocation2 + $0x1c0] sm:$0xff]
    %v147 = vld [vmem:[#allocation2 + $0x1c8] sm:$0xff]
    %v148 = vld [vmem:[#allocation2 + $0x1d0] sm:$0xff]
    %v149 = vld [vmem:[#allocation2 + $0x1d8] sm:$0xff]
    %v150 = vld [vmem:[#allocation2 + $0x1e0] sm:$0xff]
    %v151 = vld [vmem:[#allocation2 + $0x1e8] sm:$0xff]
    %v152 = vld [vmem:[#allocation2 + $0x1f0] sm:$0xff]
    %v153 = vld [vmem:[#allocation2 + $0x1f8] sm:$0xff]
    %v154 = vunpack.c.l.bf16 %v90
    %v155 = vunpack.c.h.bf16 %v90
    %v156 = vunpack.c.l.bf16 %v91
    %v157 = vunpack.c.h.bf16 %v91
    %v158 = vunpack.c.l.bf16 %v92
    %v159 = vunpack.c.h.bf16 %v92
    %v160 = vunpack.c.l.bf16 %v93
    %v161 = vunpack.c.h.bf16 %v93
    %v162 = vunpack.c.l.bf16 %v94
    %v163 = vunpack.c.h.bf16 %v94
    %v164 = vunpack.c.l.bf16 %v95
    %v165 = vunpack.c.h.bf16 %v95
    %v166 = vunpack.c.l.bf16 %v96
    %v167 = vunpack.c.h.bf16 %v96
    %v168 = vunpack.c.l.bf16 %v97
    %v169 = vunpack.c.h.bf16 %v97
    %v170 = vunpack.c.l.bf16 %v98
    %v171 = vunpack.c.h.bf16 %v98
    %v172 = vunpack.c.l.bf16 %v99
    %v173 = vunpack.c.h.bf16 %v99
    %v174 = vunpack.c.l.bf16 %v100
    %v175 = vunpack.c.h.bf16 %v100
    %v176 = vunpack.c.l.bf16 %v101
    %v177 = vunpack.c.h.bf16 %v101
    %v178 = vunpack.c.l.bf16 %v102
    %v179 = vunpack.c.h.bf16 %v102
    %v180 = vunpack.c.l.bf16 %v103
    %v181 = vunpack.c.h.bf16 %v103
    %v182 = vunpack.c.l.bf16 %v104
    %v183 = vunpack.c.h.bf16 %v104
    %v184 = vunpack.c.l.bf16 %v105
    %v185 = vunpack.c.h.bf16 %v105
    %v186 = vunpack.c.l.bf16 %v106
    %v187 = vunpack.c.h.bf16 %v106
    %v188 = vunpack.c.l.bf16 %v107
    %v189 = vunpack.c.h.bf16 %v107
    %v190 = vunpack.c.l.bf16 %v108
    %v191 = vunpack.c.h.bf16 %v108
    %v192 = vunpack.c.l.bf16 %v109
    %v193 = vunpack.c.h.bf16 %v109
    %v194 = vunpack.c.l.bf16 %v110
    %v195 = vunpack.c.h.bf16 %v110
    %v196 = vunpack.c.l.bf16 %v111
    %v197 = vunpack.c.h.bf16 %v111
    %v198 = vunpack.c.l.bf16 %v112
    %v199 = vunpack.c.h.bf16 %v112
    %v200 = vunpack.c.l.bf16 %v113
    %v201 = vunpack.c.h.bf16 %v113
    %v202 = vunpack.c.l.bf16 %v114
    %v203 = vunpack.c.h.bf16 %v114
    %v204 = vunpack.c.l.bf16 %v115
    %v205 = vunpack.c.h.bf16 %v115
    %v206 = vunpack.c.l.bf16 %v116
    %v207 = vunpack.c.h.bf16 %v116
    %v208 = vunpack.c.l.bf16 %v117
    %v209 = vunpack.c.h.bf16 %v117
    %v210 = vunpack.c.l.bf16 %v118
    %v211 = vunpack.c.h.bf16 %v118
    %v212 = vunpack.c.l.bf16 %v119
    %v213 = vunpack.c.h.bf16 %v119
    %v214 = vunpack.c.l.bf16 %v120
    %v215 = vunpack.c.h.bf16 %v120
    %v216 = vunpack.c.l.bf16 %v121
    %v217 = vunpack.c.h.bf16 %v121
    %v218 = vunpack.c.l.bf16 %v122
    %v219 = vunpack.c.h.bf16 %v122
    %v220 = vunpack.c.l.bf16 %v123
    %v221 = vunpack.c.h.bf16 %v123
    %v222 = vunpack.c.l.bf16 %v124
    %v223 = vunpack.c.h.bf16 %v124
    %v224 = vunpack.c.l.bf16 %v125
    %v225 = vunpack.c.h.bf16 %v125
    %v226 = vunpack.c.l.bf16 %v126
    %v227 = vunpack.c.h.bf16 %v126
    %v228 = vunpack.c.l.bf16 %v127
    %v229 = vunpack.c.h.bf16 %v127
    %v230 = vunpack.c.l.bf16 %v128
    %v231 = vunpack.c.h.bf16 %v128
    %v232 = vunpack.c.l.bf16 %v129
    %v233 = vunpack.c.h.bf16 %v129
    %v234 = vunpack.c.l.bf16 %v130
    %v235 = vunpack.c.h.bf16 %v130
    %v236 = vunpack.c.l.bf16 %v131
    %v237 = vunpack.c.h.bf16 %v131
    %v238 = vunpack.c.l.bf16 %v132
    %v239 = vunpack.c.h.bf16 %v132
    %v240 = vunpack.c.l.bf16 %v133
    %v241 = vunpack.c.h.bf16 %v133
    %v242 = vunpack.c.l.bf16 %v134
    %v243 = vunpack.c.h.bf16 %v134
    %v244 = vunpack.c.l.bf16 %v135
    %v245 = vunpack.c.h.bf16 %v135
    %v246 = vunpack.c.l.bf16 %v136
    %v247 = vunpack.c.h.bf16 %v136
    %v248 = vunpack.c.l.bf16 %v137
    %v249 = vunpack.c.h.bf16 %v137
    %v250 = vunpack.c.l.bf16 %v138
    %v251 = vunpack.c.h.bf16 %v138
    %v252 = vunpack.c.l.bf16 %v139
    %v253 = vunpack.c.h.bf16 %v139
    %v254 = vunpack.c.l.bf16 %v140
    %v255 = vunpack.c.h.bf16 %v140
    %v256 = vunpack.c.l.bf16 %v141
    %v257 = vunpack.c.h.bf16 %v141
    %v258 = vunpack.c.l.bf16 %v142
    %v259 = vunpack.c.h.bf16 %v142
    %v260 = vunpack.c.l.bf16 %v143
    %v261 = vunpack.c.h.bf16 %v143
    %v262 = vunpack.c.l.bf16 %v144
    %v263 = vunpack.c.h.bf16 %v144
    %v264 = vunpack.c.l.bf16 %v145
    %v265 = vunpack.c.h.bf16 %v145
    %v266 = vunpack.c.l.bf16 %v146
    %v267 = vunpack.c.h.bf16 %v146
    %v268 = vunpack.c.l.bf16 %v147
    %v269 = vunpack.c.h.bf16 %v147
    %v270 = vunpack.c.l.bf16 %v148
    %v271 = vunpack.c.h.bf16 %v148
    %v272 = vunpack.c.l.bf16 %v149
    %v273 = vunpack.c.h.bf16 %v149
    %v274 = vunpack.c.l.bf16 %v150
    %v275 = vunpack.c.h.bf16 %v150
    %v276 = vunpack.c.l.bf16 %v151
    %v277 = vunpack.c.h.bf16 %v151
    %v278 = vunpack.c.l.bf16 %v152
    %v279 = vunpack.c.h.bf16 %v152
    %v280 = vunpack.c.l.bf16 %v153
    %v281 = vunpack.c.h.bf16 %v153
    %v282 = vadd.f32 %v154, %v155
    %283 = vadd.xlane.f32.xlu0 %v282
    %v284 = vpop.xlane.xlu0 %283
    %v285 = vadd.f32 %v156, %v157
    %286 = vadd.xlane.f32.xlu0 %v285
    %v287 = vpop.xlane.xlu0 %286
    %v288 = vadd.f32 %v158, %v159
    %289 = vadd.xlane.f32.xlu0 %v288
    %v290 = vpop.xlane.xlu0 %289
    %v291 = vadd.f32 %v160, %v161
    %292 = vadd.xlane.f32.xlu0 %v291
    %v293 = vpop.xlane.xlu0 %292
    %v294 = vadd.f32 %v162, %v163
    %295 = vadd.xlane.f32.xlu0 %v294
    %v296 = vpop.xlane.xlu0 %295
    %v297 = vadd.f32 %v164, %v165
    %298 = vadd.xlane.f32.xlu0 %v297
    %v299 = vpop.xlane.xlu0 %298
    %v300 = vadd.f32 %v166, %v167
    %301 = vadd.xlane.f32.xlu0 %v300
    %v302 = vpop.xlane.xlu0 %301
    %v303 = vadd.f32 %v168, %v169
    %304 = vadd.xlane.f32.xlu0 %v303
    %v305 = vpop.xlane.xlu0 %304
    %v306 = vadd.f32 %v170, %v171
    %307 = vadd.xlane.f32.xlu0 %v306
    %v308 = vpop.xlane.xlu0 %307
    %v309 = vadd.f32 %v172, %v173
    %310 = vadd.xlane.f32.xlu0 %v309
    %v311 = vpop.xlane.xlu0 %310
    %v312 = vadd.f32 %v174, %v175
    %313 = vadd.xlane.f32.xlu0 %v312
    %v314 = vpop.xlane.xlu0 %313
    %v315 = vadd.f32 %v176, %v177
    %316 = vadd.xlane.f32.xlu0 %v315
    %v317 = vpop.xlane.xlu0 %316
    %v318 = vadd.f32 %v178, %v179
    %319 = vadd.xlane.f32.xlu0 %v318
    %v320 = vpop.xlane.xlu0 %319
    %v321 = vadd.f32 %v180, %v181
    %322 = vadd.xlane.f32.xlu0 %v321
    %v323 = vpop.xlane.xlu0 %322
    %v324 = vadd.f32 %v182, %v183
    %325 = vadd.xlane.f32.xlu0 %v324
    %v326 = vpop.xlane.xlu0 %325
    %v327 = vadd.f32 %v184, %v185
    %328 = vadd.xlane.f32.xlu0 %v327
    %v329 = vpop.xlane.xlu0 %328
    %v330 = vadd.f32 %v186, %v187
    %331 = vadd.xlane.f32.xlu0 %v330
    %v332 = vpop.xlane.xlu0 %331
    %v333 = vadd.f32 %v188, %v189
    %334 = vadd.xlane.f32.xlu0 %v333
    %v335 = vpop.xlane.xlu0 %334
    %v336 = vadd.f32 %v190, %v191
    %337 = vadd.xlane.f32.xlu0 %v336
    %v338 = vpop.xlane.xlu0 %337
    %v339 = vadd.f32 %v192, %v193
    %340 = vadd.xlane.f32.xlu0 %v339
    %v341 = vpop.xlane.xlu0 %340
    %v342 = vadd.f32 %v194, %v195
    %343 = vadd.xlane.f32.xlu0 %v342
    %v344 = vpop.xlane.xlu0 %343
    %v345 = vadd.f32 %v196, %v197
    %346 = vadd.xlane.f32.xlu0 %v345
    %v347 = vpop.xlane.xlu0 %346
    %v348 = vadd.f32 %v198, %v199
    %349 = vadd.xlane.f32.xlu0 %v348
    %v350 = vpop.xlane.xlu0 %349
    %v351 = vadd.f32 %v200, %v201
    %352 = vadd.xlane.f32.xlu0 %v351
    %v353 = vpop.xlane.xlu0 %352
    %v354 = vadd.f32 %v202, %v203
    %355 = vadd.xlane.f32.xlu0 %v354
    %v356 = vpop.xlane.xlu0 %355
    %v357 = vadd.f32 %v204, %v205
    %358 = vadd.xlane.f32.xlu0 %v357
    %v359 = vpop.xlane.xlu0 %358
    %v360 = vadd.f32 %v206, %v207
    %361 = vadd.xlane.f32.xlu0 %v360
    %v362 = vpop.xlane.xlu0 %361
    %v363 = vadd.f32 %v208, %v209
    %364 = vadd.xlane.f32.xlu0 %v363
    %v365 = vpop.xlane.xlu0 %364
    %v366 = vadd.f32 %v210, %v211
    %367 = vadd.xlane.f32.xlu0 %v366
    %v368 = vpop.xlane.xlu0 %367
    %v369 = vadd.f32 %v212, %v213
    %370 = vadd.xlane.f32.xlu0 %v369
    %v371 = vpop.xlane.xlu0 %370
    %v372 = vadd.f32 %v214, %v215
    %373 = vadd.xlane.f32.xlu0 %v372
    %v374 = vpop.xlane.xlu0 %373
    %v375 = vadd.f32 %v216, %v217
    %376 = vadd.xlane.f32.xlu0 %v375
    %v377 = vpop.xlane.xlu0 %376
    %v378 = vadd.f32 %v218, %v219
    %379 = vadd.xlane.f32.xlu0 %v378
    %v380 = vpop.xlane.xlu0 %379
    %v381 = vadd.f32 %v220, %v221
    %382 = vadd.xlane.f32.xlu0 %v381
    %v383 = vpop.xlane.xlu0 %382
    %v384 = vadd.f32 %v222, %v223
    %385 = vadd.xlane.f32.xlu0 %v384
    %v386 = vpop.xlane.xlu0 %385
    %v387 = vadd.f32 %v224, %v225
    %388 = vadd.xlane.f32.xlu0 %v387
    %v389 = vpop.xlane.xlu0 %388
    %v390 = vadd.f32 %v226, %v227
    %391 = vadd.xlane.f32.xlu0 %v390
    %v392 = vpop.xlane.xlu0 %391
    %v393 = vadd.f32 %v228, %v229
    %394 = vadd.xlane.f32.xlu0 %v393
    %v395 = vpop.xlane.xlu0 %394
    %v396 = vadd.f32 %v230, %v231
    %397 = vadd.xlane.f32.xlu0 %v396
    %v398 = vpop.xlane.xlu0 %397
    %v399 = vadd.f32 %v232, %v233
    %400 = vadd.xlane.f32.xlu0 %v399
    %v401 = vpop.xlane.xlu0 %400
    %v402 = vadd.f32 %v234, %v235
    %403 = vadd.xlane.f32.xlu0 %v402
    %v404 = vpop.xlane.xlu0 %403
    %v405 = vadd.f32 %v236, %v237
    %406 = vadd.xlane.f32.xlu0 %v405
    %v407 = vpop.xlane.xlu0 %406
    %v408 = vadd.f32 %v238, %v239
    %409 = vadd.xlane.f32.xlu0 %v408
    %v410 = vpop.xlane.xlu0 %409
    %v411 = vadd.f32 %v240, %v241
    %412 = vadd.xlane.f32.xlu0 %v411
    %v413 = vpop.xlane.xlu0 %412
    %v414 = vadd.f32 %v242, %v243
    %415 = vadd.xlane.f32.xlu0 %v414
    %v416 = vpop.xlane.xlu0 %415
    %v417 = vadd.f32 %v244, %v245
    %418 = vadd.xlane.f32.xlu0 %v417
    %v419 = vpop.xlane.xlu0 %418
    %v420 = vadd.f32 %v246, %v247
    %421 = vadd.xlane.f32.xlu0 %v420
    %v422 = vpop.xlane.xlu0 %421
    %v423 = vadd.f32 %v248, %v249
    %424 = vadd.xlane.f32.xlu0 %v423
    %v425 = vpop.xlane.xlu0 %424
    %v426 = vadd.f32 %v250, %v251
    %427 = vadd.xlane.f32.xlu0 %v426
    %v428 = vpop.xlane.xlu0 %427
    %v429 = vadd.f32 %v252, %v253
    %430 = vadd.xlane.f32.xlu0 %v429
    %v431 = vpop.xlane.xlu0 %430
    %v432 = vadd.f32 %v254, %v255
    %433 = vadd.xlane.f32.xlu0 %v432
    %v434 = vpop.xlane.xlu0 %433
    %v435 = vadd.f32 %v256, %v257
    %436 = vadd.xlane.f32.xlu0 %v435
    %v437 = vpop.xlane.xlu0 %436
    %v438 = vadd.f32 %v258, %v259
    %439 = vadd.xlane.f32.xlu0 %v438
    %v440 = vpop.xlane.xlu0 %439
    %v441 = vadd.f32 %v260, %v261
    %442 = vadd.xlane.f32.xlu0 %v441
    %v443 = vpop.xlane.xlu0 %442
    %v444 = vadd.f32 %v262, %v263
    %445 = vadd.xlane.f32.xlu0 %v444
    %v446 = vpop.xlane.xlu0 %445
    %v447 = vadd.f32 %v264, %v265
    %448 = vadd.xlane.f32.xlu0 %v447
    %v449 = vpop.xlane.xlu0 %448
    %v450 = vadd.f32 %v266, %v267
    %451 = vadd.xlane.f32.xlu0 %v450
    %v452 = vpop.xlane.xlu0 %451
    %v453 = vadd.f32 %v268, %v269
    %454 = vadd.xlane.f32.xlu0 %v453
    %v455 = vpop.xlane.xlu0 %454
    %v456 = vadd.f32 %v270, %v271
    %457 = vadd.xlane.f32.xlu0 %v456
    %v458 = vpop.xlane.xlu0 %457
    %v459 = vadd.f32 %v272, %v273
    %460 = vadd.xlane.f32.xlu0 %v459
    %v461 = vpop.xlane.xlu0 %460
    %v462 = vadd.f32 %v274, %v275
    %463 = vadd.xlane.f32.xlu0 %v462
    %v464 = vpop.xlane.xlu0 %463
    %v465 = vadd.f32 %v276, %v277
    %466 = vadd.xlane.f32.xlu0 %v465
    %v467 = vpop.xlane.xlu0 %466
    %v468 = vadd.f32 %v278, %v279
    %469 = vadd.xlane.f32.xlu0 %v468
    %v470 = vpop.xlane.xlu0 %469
    %v471 = vadd.f32 %v280, %v281
    %472 = vadd.xlane.f32.xlu0 %v471
    %v473 = vpop.xlane.xlu0 %472
    %v474 = vpack.c.bf16 %v287, %v284
    %v475 = vpack.c.bf16 %v293, %v290
    %v476 = vpack.c.bf16 %v299, %v296
    %v477 = vpack.c.bf16 %v305, %v302
    %v478 = vpack.c.bf16 %v311, %v308
    %v479 = vpack.c.bf16 %v317, %v314
    %v480 = vpack.c.bf16 %v323, %v320
    %v481 = vpack.c.bf16 %v329, %v326
    %v482 = vpack.c.bf16 %v335, %v332
    %v483 = vpack.c.bf16 %v341, %v338
    %v484 = vpack.c.bf16 %v347, %v344
    %v485 = vpack.c.bf16 %v353, %v350
    %v486 = vpack.c.bf16 %v359, %v356
    %v487 = vpack.c.bf16 %v365, %v362
    %v488 = vpack.c.bf16 %v371, %v368
    %v489 = vpack.c.bf16 %v377, %v374
    %v490 = vpack.c.bf16 %v383, %v380
    %v491 = vpack.c.bf16 %v389, %v386
    %v492 = vpack.c.bf16 %v395, %v392
    %v493 = vpack.c.bf16 %v401, %v398
    %v494 = vpack.c.bf16 %v407, %v404
    %v495 = vpack.c.bf16 %v413, %v410
    %v496 = vpack.c.bf16 %v419, %v416
    %v497 = vpack.c.bf16 %v425, %v422
    %v498 = vpack.c.bf16 %v431, %v428
    %v499 = vpack.c.bf16 %v437, %v434
    %v500 = vpack.c.bf16 %v443, %v440
    %v501 = vpack.c.bf16 %v449, %v446
    %v502 = vpack.c.bf16 %v455, %v452
    %v503 = vpack.c.bf16 %v461, %v458
    %v504 = vpack.c.bf16 %v467, %v464
    %v505 = vpack.c.bf16 %v473, %v470
    %v506 = vld [vmem:[#allocation7] sm:$0xf]
    %v507 = vld [vmem:[#allocation7 + $0x4] sm:$0xf]
    %v508 = vld [vmem:[#allocation7 + $0x8] sm:$0xf]
    %v509 = vld [vmem:[#allocation7 + $0xc] sm:$0xf]
    %v510 = vld [vmem:[#allocation7 + $0x10] sm:$0xf]
    %v511 = vld [vmem:[#allocation7 + $0x14] sm:$0xf]
    %v512 = vld [vmem:[#allocation7 + $0x18] sm:$0xf]
    %v513 = vld [vmem:[#allocation7 + $0x1c] sm:$0xf]
    %v514 = vlaneseq
    %v515 = vshrl.u32 %v514, 7
    %v516 = vsub.s32 0, %v515
    %v517 = vrot.slane %v89, %v516
    %v550 = vunpack.c.l.b16 %v474
    %v551 = vunpack.c.h.b16 %v474
    %v552 = vunpack.c.l.b16 %v475
    %v553 = vunpack.c.h.b16 %v475
    %v554 = vunpack.c.l.b16 %v476
    %v555 = vunpack.c.h.b16 %v476
    %v556 = vunpack.c.l.b16 %v477
    %v557 = vunpack.c.h.b16 %v477
    %v558 = vunpack.c.l.b16 %v478
    %v559 = vunpack.c.h.b16 %v478
    %v560 = vunpack.c.l.b16 %v479
    %v561 = vunpack.c.h.b16 %v479
    %v562 = vunpack.c.l.b16 %v480
    %v563 = vunpack.c.h.b16 %v480
    %v564 = vunpack.c.l.b16 %v481
    %v565 = vunpack.c.h.b16 %v481
    %v566 = vunpack.c.l.b16 %v482
    %v567 = vunpack.c.h.b16 %v482
    %v568 = vunpack.c.l.b16 %v483
    %v569 = vunpack.c.h.b16 %v483
    %v570 = vunpack.c.l.b16 %v484
    %v571 = vunpack.c.h.b16 %v484
    %v572 = vunpack.c.l.b16 %v485
    %v573 = vunpack.c.h.b16 %v485
    %v574 = vunpack.c.l.b16 %v486
    %v575 = vunpack.c.h.b16 %v486
    %v576 = vunpack.c.l.b16 %v487
    %v577 = vunpack.c.h.b16 %v487
    %v578 = vunpack.c.l.b16 %v488
    %v579 = vunpack.c.h.b16 %v488
    %v580 = vunpack.c.l.b16 %v489
    %v581 = vunpack.c.h.b16 %v489
    %v582 = vunpack.c.l.b16 %v490
    %v583 = vunpack.c.h.b16 %v490
    %v584 = vunpack.c.l.b16 %v491
    %v585 = vunpack.c.h.b16 %v491
    %v586 = vunpack.c.l.b16 %v492
    %v587 = vunpack.c.h.b16 %v492
    %v588 = vunpack.c.l.b16 %v493
    %v589 = vunpack.c.h.b16 %v493
    %v590 = vunpack.c.l.b16 %v494
    %v591 = vunpack.c.h.b16 %v494
    %v592 = vunpack.c.l.b16 %v495
    %v593 = vunpack.c.h.b16 %v495
    %v594 = vunpack.c.l.b16 %v496
    %v595 = vunpack.c.h.b16 %v496
    %v596 = vunpack.c.l.b16 %v497
    %v597 = vunpack.c.h.b16 %v497
    %v598 = vunpack.c.l.b16 %v498
    %v599 = vunpack.c.h.b16 %v498
    %v600 = vunpack.c.l.b16 %v499
    %v601 = vunpack.c.h.b16 %v499
    %v602 = vunpack.c.l.b16 %v500
    %v603 = vunpack.c.h.b16 %v500
    %v604 = vunpack.c.l.b16 %v501
    %v605 = vunpack.c.h.b16 %v501
    %v606 = vunpack.c.l.b16 %v502
    %v607 = vunpack.c.h.b16 %v502
    %v608 = vunpack.c.l.b16 %v503
    %v609 = vunpack.c.h.b16 %v503
    %v610 = vunpack.c.l.b16 %v504
    %v611 = vunpack.c.h.b16 %v504
    %v612 = vunpack.c.l.b16 %v505
    %v613 = vunpack.c.h.b16 %v505
    %v614 = vlaneseq
    %v615 = vand.u32 %v614, 127
    %v616 = vlaneseq
    %v617 = vshrl.u32 %v616, 7
    %v618 = vsub.s32 %v615, %v617
    %v619 = vrot.slane %v550, %v618
    %v620 = vadd.s32 %v615, 4294967288
    %v621 = vlaneseq
    %v622 = vshrl.u32 %v621, 7
    %v623 = vsub.s32 %v620, %v622
    %v624 = vrot.slane %v551, %v623
    %vm625 = vcmask 130112
    %v626 = vsel %vm625, %v624, %v619
    %v627 = vadd.s32 %v615, 4294967280
    %v628 = vlaneseq
    %v629 = vshrl.u32 %v628, 7
    %v630 = vsub.s32 %v627, %v629
    %v631 = vrot.slane %v552, %v630
    %vm632 = vcmask 195712
    %v633 = vsel %vm632, %v631, %v626
    %v634 = vadd.s32 %v615, 4294967272
    %v635 = vlaneseq
    %v636 = vshrl.u32 %v635, 7
    %v637 = vsub.s32 %v634, %v636
    %v638 = vrot.slane %v553, %v637
    %vm639 = vcmask 261312
    %v640 = vsel %vm639, %v638, %v633
    %v641 = vadd.s32 %v615, 4294967264
    %v642 = vlaneseq
    %v643 = vshrl.u32 %v642, 7
    %v644 = vsub.s32 %v641, %v643
    %v645 = vrot.slane %v554, %v644
    %vm646 = vcmask 326912
    %v647 = vsel %vm646, %v645, %v640
    %v648 = vadd.s32 %v615, 4294967256
    %v649 = vlaneseq
    %v650 = vshrl.u32 %v649, 7
    %v651 = vsub.s32 %v648, %v650
    %v652 = vrot.slane %v555, %v651
    %vm653 = vcmask 392512
    %v654 = vsel %vm653, %v652, %v647
    %v655 = vadd.s32 %v615, 4294967248
    %v656 = vlaneseq
    %v657 = vshrl.u32 %v656, 7
    %v658 = vsub.s32 %v655, %v657
    %v659 = vrot.slane %v556, %v658
    %vm660 = vcmask 458112
    %v661 = vsel %vm660, %v659, %v654
    %v662 = vadd.s32 %v615, 4294967240
    %v663 = vlaneseq
    %v664 = vshrl.u32 %v663, 7
    %v665 = vsub.s32 %v662, %v664
    %v666 = vrot.slane %v557, %v665
    %vm667 = vcmask 523712
    %v668 = vsel %vm667, %v666, %v661
    %v669 = vlaneseq
    %v670 = vshrl.u32 %v669, 7
    %v671 = vsub.s32 %v615, %v670
    %v672 = vrot.slane %v558, %v671
    %v673 = vlaneseq
    %v674 = vshrl.u32 %v673, 7
    %v675 = vsub.s32 %v620, %v674
    %v676 = vrot.slane %v559, %v675
    %v677 = vsel %vm625, %v676, %v672
    %v678 = vlaneseq
    %v679 = vshrl.u32 %v678, 7
    %v680 = vsub.s32 %v627, %v679
    %v681 = vrot.slane %v560, %v680
    %v682 = vsel %vm632, %v681, %v677
    %v683 = vlaneseq
    %v684 = vshrl.u32 %v683, 7
    %v685 = vsub.s32 %v634, %v684
    %v686 = vrot.slane %v561, %v685
    %v687 = vsel %vm639, %v686, %v682
    %v688 = vlaneseq
    %v689 = vshrl.u32 %v688, 7
    %v690 = vsub.s32 %v641, %v689
    %v691 = vrot.slane %v562, %v690
    %v692 = vsel %vm646, %v691, %v687
    %v693 = vlaneseq
    %v694 = vshrl.u32 %v693, 7
    %v695 = vsub.s32 %v648, %v694
    %v696 = vrot.slane %v563, %v695
    %v697 = vsel %vm653, %v696, %v692
    %v698 = vlaneseq
    %v699 = vshrl.u32 %v698, 7
    %v700 = vsub.s32 %v655, %v699
    %v701 = vrot.slane %v564, %v700
    %v702 = vsel %vm660, %v701, %v697
    %v703 = vlaneseq
    %v704 = vshrl.u32 %v703, 7
    %v705 = vsub.s32 %v662, %v704
    %v706 = vrot.slane %v565, %v705
    %v707 = vsel %vm667, %v706, %v702
    %v708 = vlaneseq
    %v709 = vshrl.u32 %v708, 7
    %v710 = vsub.s32 %v615, %v709
    %v711 = vrot.slane %v566, %v710
    %v712 = vlaneseq
    %v713 = vshrl.u32 %v712, 7
    %v714 = vsub.s32 %v620, %v713
    %v715 = vrot.slane %v567, %v714
    %v716 = vsel %vm625, %v715, %v711
    %v717 = vlaneseq
    %v718 = vshrl.u32 %v717, 7
    %v719 = vsub.s32 %v627, %v718
    %v720 = vrot.slane %v568, %v719
    %v721 = vsel %vm632, %v720, %v716
    %v722 = vlaneseq
    %v723 = vshrl.u32 %v722, 7
    %v724 = vsub.s32 %v634, %v723
    %v725 = vrot.slane %v569, %v724
    %v726 = vsel %vm639, %v725, %v721
    %v727 = vlaneseq
    %v728 = vshrl.u32 %v727, 7
    %v729 = vsub.s32 %v641, %v728
    %v730 = vrot.slane %v570, %v729
    %v731 = vsel %vm646, %v730, %v726
    %v732 = vlaneseq
    %v733 = vshrl.u32 %v732, 7
    %v734 = vsub.s32 %v648, %v733
    %v735 = vrot.slane %v571, %v734
    %v736 = vsel %vm653, %v735, %v731
    %v737 = vlaneseq
    %v738 = vshrl.u32 %v737, 7
    %v739 = vsub.s32 %v655, %v738
    %v740 = vrot.slane %v572, %v739
    %v741 = vsel %vm660, %v740, %v736
    %v742 = vlaneseq
    %v743 = vshrl.u32 %v742, 7
    %v744 = vsub.s32 %v662, %v743
    %v745 = vrot.slane %v573, %v744
    %v746 = vsel %vm667, %v745, %v741
    %v747 = vlaneseq
    %v748 = vshrl.u32 %v747, 7
    %v749 = vsub.s32 %v615, %v748
    %v750 = vrot.slane %v574, %v749
    %v751 = vlaneseq
    %v752 = vshrl.u32 %v751, 7
    %v753 = vsub.s32 %v620, %v752
    %v754 = vrot.slane %v575, %v753
    %v755 = vsel %vm625, %v754, %v750
    %v756 = vlaneseq
    %v757 = vshrl.u32 %v756, 7
    %v758 = vsub.s32 %v627, %v757
    %v759 = vrot.slane %v576, %v758
    %v760 = vsel %vm632, %v759, %v755
    %v761 = vlaneseq
    %v762 = vshrl.u32 %v761, 7
    %v763 = vsub.s32 %v634, %v762
    %v764 = vrot.slane %v577, %v763
    %v765 = vsel %vm639, %v764, %v760
    %v766 = vlaneseq
    %v767 = vshrl.u32 %v766, 7
    %v768 = vsub.s32 %v641, %v767
    %v769 = vrot.slane %v578, %v768
    %v770 = vsel %vm646, %v769, %v765
    %v771 = vlaneseq
    %v772 = vshrl.u32 %v771, 7
    %v773 = vsub.s32 %v648, %v772
    %v774 = vrot.slane %v579, %v773
    %v775 = vsel %vm653, %v774, %v770
    %v776 = vlaneseq
    %v777 = vshrl.u32 %v776, 7
    %v778 = vsub.s32 %v655, %v777
    %v779 = vrot.slane %v580, %v778
    %v780 = vsel %vm660, %v779, %v775
    %v781 = vlaneseq
    %v782 = vshrl.u32 %v781, 7
    %v783 = vsub.s32 %v662, %v782
    %v784 = vrot.slane %v581, %v783
    %v785 = vsel %vm667, %v784, %v780
    %v786 = vlaneseq
    %v787 = vshrl.u32 %v786, 7
    %v788 = vsub.s32 %v615, %v787
    %v789 = vrot.slane %v582, %v788
    %v790 = vlaneseq
    %v791 = vshrl.u32 %v790, 7
    %v792 = vsub.s32 %v620, %v791
    %v793 = vrot.slane %v583, %v792
    %v794 = vsel %vm625, %v793, %v789
    %v795 = vlaneseq
    %v796 = vshrl.u32 %v795, 7
    %v797 = vsub.s32 %v627, %v796
    %v798 = vrot.slane %v584, %v797
    %v799 = vsel %vm632, %v798, %v794
    %v800 = vlaneseq
    %v801 = vshrl.u32 %v800, 7
    %v802 = vsub.s32 %v634, %v801
    %v803 = vrot.slane %v585, %v802
    %v804 = vsel %vm639, %v803, %v799
    %v805 = vlaneseq
    %v806 = vshrl.u32 %v805, 7
    %v807 = vsub.s32 %v641, %v806
    %v808 = vrot.slane %v586, %v807
    %v809 = vsel %vm646, %v808, %v804
    %v810 = vlaneseq
    %v811 = vshrl.u32 %v810, 7
    %v812 = vsub.s32 %v648, %v811
    %v813 = vrot.slane %v587, %v812
    %v814 = vsel %vm653, %v813, %v809
    %v815 = vlaneseq
    %v816 = vshrl.u32 %v815, 7
    %v817 = vsub.s32 %v655, %v816
    %v818 = vrot.slane %v588, %v817
    %v819 = vsel %vm660, %v818, %v814
    %v820 = vlaneseq
    %v821 = vshrl.u32 %v820, 7
    %v822 = vsub.s32 %v662, %v821
    %v823 = vrot.slane %v589, %v822
    %v824 = vsel %vm667, %v823, %v819
    %v825 = vlaneseq
    %v826 = vshrl.u32 %v825, 7
    %v827 = vsub.s32 %v615, %v826
    %v828 = vrot.slane %v590, %v827
    %v829 = vlaneseq
    %v830 = vshrl.u32 %v829, 7
    %v831 = vsub.s32 %v620, %v830
    %v832 = vrot.slane %v591, %v831
    %v833 = vsel %vm625, %v832, %v828
    %v834 = vlaneseq
    %v835 = vshrl.u32 %v834, 7
    %v836 = vsub.s32 %v627, %v835
    %v837 = vrot.slane %v592, %v836
    %v838 = vsel %vm632, %v837, %v833
    %v839 = vlaneseq
    %v840 = vshrl.u32 %v839, 7
    %v841 = vsub.s32 %v634, %v840
    %v842 = vrot.slane %v593, %v841
    %v843 = vsel %vm639, %v842, %v838
    %v844 = vlaneseq
    %v845 = vshrl.u32 %v844, 7
    %v846 = vsub.s32 %v641, %v845
    %v847 = vrot.slane %v594, %v846
    %v848 = vsel %vm646, %v847, %v843
    %v849 = vlaneseq
    %v850 = vshrl.u32 %v849, 7
    %v851 = vsub.s32 %v648, %v850
    %v852 = vrot.slane %v595, %v851
    %v853 = vsel %vm653, %v852, %v848
    %v854 = vlaneseq
    %v855 = vshrl.u32 %v854, 7
    %v856 = vsub.s32 %v655, %v855
    %v857 = vrot.slane %v596, %v856
    %v858 = vsel %vm660, %v857, %v853
    %v859 = vlaneseq
    %v860 = vshrl.u32 %v859, 7
    %v861 = vsub.s32 %v662, %v860
    %v862 = vrot.slane %v597, %v861
    %v863 = vsel %vm667, %v862, %v858
    %v864 = vlaneseq
    %v865 = vshrl.u32 %v864, 7
    %v866 = vsub.s32 %v615, %v865
    %v867 = vrot.slane %v598, %v866
    %v868 = vlaneseq
    %v869 = vshrl.u32 %v868, 7
    %v870 = vsub.s32 %v620, %v869
    %v871 = vrot.slane %v599, %v870
    %v872 = vsel %vm625, %v871, %v867
    %v873 = vlaneseq
    %v874 = vshrl.u32 %v873, 7
    %v875 = vsub.s32 %v627, %v874
    %v876 = vrot.slane %v600, %v875
    %v877 = vsel %vm632, %v876, %v872
    %v878 = vlaneseq
    %v879 = vshrl.u32 %v878, 7
    %v880 = vsub.s32 %v634, %v879
    %v881 = vrot.slane %v601, %v880
    %v882 = vsel %vm639, %v881, %v877
    %v883 = vlaneseq
    %v884 = vshrl.u32 %v883, 7
    %v885 = vsub.s32 %v641, %v884
    %v886 = vrot.slane %v602, %v885
    %v887 = vsel %vm646, %v886, %v882
    %v888 = vlaneseq
    %v889 = vshrl.u32 %v888, 7
    %v890 = vsub.s32 %v648, %v889
    %v891 = vrot.slane %v603, %v890
    %v892 = vsel %vm653, %v891, %v887
    %v893 = vlaneseq
    %v894 = vshrl.u32 %v893, 7
    %v895 = vsub.s32 %v655, %v894
    %v896 = vrot.slane %v604, %v895
    %v897 = vsel %vm660, %v896, %v892
    %v898 = vlaneseq
    %v899 = vshrl.u32 %v898, 7
    %v900 = vsub.s32 %v662, %v899
    %v901 = vrot.slane %v605, %v900
    %v902 = vsel %vm667, %v901, %v897
    %v903 = vlaneseq
    %v904 = vshrl.u32 %v903, 7
    %v905 = vsub.s32 %v615, %v904
    %v906 = vrot.slane %v606, %v905
    %v907 = vlaneseq
    %v908 = vshrl.u32 %v907, 7
    %v909 = vsub.s32 %v620, %v908
    %v910 = vrot.slane %v607, %v909
    %v911 = vsel %vm625, %v910, %v906
    %v912 = vlaneseq
    %v913 = vshrl.u32 %v912, 7
    %v914 = vsub.s32 %v627, %v913
    %v915 = vrot.slane %v608, %v914
    %v916 = vsel %vm632, %v915, %v911
    %v917 = vlaneseq
    %v918 = vshrl.u32 %v917, 7
    %v919 = vsub.s32 %v634, %v918
    %v920 = vrot.slane %v609, %v919
    %v921 = vsel %vm639, %v920, %v916
    %v922 = vlaneseq
    %v923 = vshrl.u32 %v922, 7
    %v924 = vsub.s32 %v641, %v923
    %v925 = vrot.slane %v610, %v924
    %v926 = vsel %vm646, %v925, %v921
    %v927 = vlaneseq
    %v928 = vshrl.u32 %v927, 7
    %v929 = vsub.s32 %v648, %v928
    %v930 = vrot.slane %v611, %v929
    %v931 = vsel %vm653, %v930, %v926
    %v932 = vlaneseq
    %v933 = vshrl.u32 %v932, 7
    %v934 = vsub.s32 %v655, %v933
    %v935 = vrot.slane %v612, %v934
    %v936 = vsel %vm660, %v935, %v931
    %v937 = vlaneseq
    %v938 = vshrl.u32 %v937, 7
    %v939 = vsub.s32 %v662, %v938
    %v940 = vrot.slane %v613, %v939
    %v941 = vsel %vm667, %v940, %v936
    %vm942 = vcmask 1041409
    %v943 = vsel %vm942, %v707, %v668
    %vm944 = vcmask 1042434
    %v945 = vsel %vm944, %v746, %v943
    %vm946 = vcmask 1043459
    %v947 = vsel %vm946, %v785, %v945
    %vm948 = vcmask 1044484
    %v949 = vsel %vm948, %v824, %v947
    %vm950 = vcmask 1045509
    %v951 = vsel %vm950, %v863, %v949
    %vm952 = vcmask 1046534
    %v953 = vsel %vm952, %v902, %v951
    %vm954 = vcmask 1047559
    %v955 = vsel %vm954, %v941, %v953
    %v956 = vpack.c.b16 %v955, %v955
    %v965 = vunpack.c.l.b16 %v506
    %v966 = vunpack.c.l.b16 %v507
    %v967 = vunpack.c.l.b16 %v508
    %v968 = vunpack.c.l.b16 %v509
    %v969 = vunpack.c.l.b16 %v510
    %v970 = vunpack.c.l.b16 %v511
    %v971 = vunpack.c.l.b16 %v512
    %v972 = vunpack.c.l.b16 %v513
    %v973 = vpack.c.b16 %v966, %v965
    %v974 = vpack.c.b16 %v968, %v967
    %v975 = vpack.c.b16 %v970, %v969
    %v976 = vpack.c.b16 %v972, %v971
    %vm981 = vcmask 523264
    %v983 = vsel %vm981, %v956, 0
    %985 = vmatprep.subr.bf16.mxu0 0
    %986 = vmatpush1.bf16.msra.mxu0 0
    %987 = vmatprep.subr.bf16.mxu0 0
    %988 = vmatpush1.bf16.msra.mxu0 0
    %989 = vmatprep.subr.bf16.mxu0 0
    %990 = vmatpush1.bf16.msra.mxu0 0
    %991 = vmatprep.subr.bf16.mxu0 0
    %992 = vmatpush1.bf16.msra.mxu0 0
    %993 = vmatprep.subr.bf16.mxu0 0
    %994 = vmatpush1.bf16.msra.mxu0 %v976
    %995 = vmatprep.subr.bf16.mxu0 0
    %996 = vmatpush1.bf16.msra.mxu0 %v975
    %997 = vmatprep.subr.bf16.mxu0 0
    %998 = vmatpush1.bf16.msra.mxu0 %v974
    %999 = vmatprep.subr.bf16.mxu0 0
    %1000 = vmatpush1.bf16.msra.mxu0 %v973
    %1001 = vmatprep.subr.bf16.mxu0 0
    %1002 = vmatpush2.bf16.msra.mxu0 0
    %1003 = vmatprep.subr.bf16.mxu0 0
    %1004 = vmatpush2.bf16.msra.mxu0 0
    %1005 = vmatprep.subr.bf16.mxu0 0
    %1006 = vmatpush2.bf16.msra.mxu0 0
    %1007 = vmatprep.subr.bf16.mxu0 0
    %1008 = vmatpush2.bf16.msra.mxu0 0
    %1009 = vmatprep.subr.bf16.mxu0 0
    %1010 = vmatpush2.bf16.msra.mxu0 0
    %1011 = vmatprep.subr.bf16.mxu0 0
    %1012 = vmatpush2.bf16.msra.mxu0 0
    %1013 = vmatprep.subr.bf16.mxu0 0
    %1014 = vmatpush2.bf16.msra.mxu0 0
    %1015 = vmatprep.subr.bf16.mxu0 0
    %1016 = vmatpush2.bf16.msra.mxu0 0
    %1017 = vmatprep.mubr.bf16.mxu0 0
    %1018 = vmatmul.mubr.bf16.gmra.mxu0 %v983
    %v1019 = vpop.f32.mrf.mxu0
    %v1020 = vadd.f32 %v517, %v1019
    %v1021 = vpop.f32.mrf.mxu0
    %v1022 = vpop.f32.mrf.mxu0
    %v1023 = vpop.f32.mrf.mxu0
    %1024 = vdwg.mxu0
    %v1025 = vtanh.pop %v1020
    %vm1026 = vcmp.lt.s32.totalorder %v615, 32
    %v1027 = vsel %vm1026, 1, 0
    %v1028 = vcvt.s32.f32 %v1027
    %v1029 = vmul.f32 %v1025, %v1028
    %1030 = vadd.xlane.f32.xlu0 %v1029
    %v1031 = vpop.xlane.xlu0 %1030
    %v1032 = vmul.f32 %v1031, 0.03125
    %v1033 = vsub.f32 %v1029, %v1032
    %v1034 = vmul.f32 %v1033, %v1028
    %v1035 = vmul.f32 %v1034, %v1034
    %1036 = vadd.xlane.f32.xlu0 %v1035
    %v1037 = vpop.xlane.xlu0 %1036
    %v1038 = vmul.f32 %v1037, 0.03125
    %v1039 = vadd.f32 %v1038, 1e-05
    %v1040 = vrsqrt.pop %v1039
    %v1041 = vmul.f32 %v1034, %v1040
    %v1042 = vlaneseq
    %v1043 = vshrl.u32 %v1042, 7
    %v1044 = vsub.s32 1, %v1043
    %v1045 = vrot.slane %v89, %v1044
    %v1046 = vmul.f32 %v1041, %v1045
    %v1047 = vlaneseq
    %v1048 = vshrl.u32 %v1047, 7
    %v1049 = vsub.s32 2, %v1048
    %v1050 = vrot.slane %v89, %v1049
    %v1051 = vadd.f32 %v1046, %v1050
    %1052 = vst [vmem:[#allocation11] sm:$0xff] %v1051
    %v1053 = vld [vmem:[#allocation5] sm:$0xff]
    %v1054 = vpack.c.bf16 %v1053, %v1053
    %v1055 = vld [vmem:[#allocation8] sm:$0xf]
    %v1056 = vld [vmem:[#allocation8 + $0x4] sm:$0xf]
    %v1057 = vld [vmem:[#allocation8 + $0x8] sm:$0xf]
    %v1058 = vld [vmem:[#allocation8 + $0xc] sm:$0xf]
    %v1059 = vld [vmem:[#allocation8 + $0x10] sm:$0xf]
    %v1060 = vlaneseq
    %v1061 = vshrl.u32 %v1060, 7
    %v1062 = vsub.s32 3, %v1061
    %v1063 = vrot.slane %v89, %v1062
    %v1069 = vunpack.c.l.b16 %v1055
    %v1070 = vunpack.c.l.b16 %v1056
    %v1071 = vunpack.c.l.b16 %v1057
    %v1072 = vunpack.c.l.b16 %v1058
    %v1073 = vunpack.c.l.b16 %v1059
    %v1074 = vpack.c.b16 %v1070, %v1069
    %v1075 = vpack.c.b16 %v1072, %v1071
    %v1076 = vpack.c.b16 %v1073, %v1073
    %vm1079 = vcmask 326656
    %v1081 = vsel %vm1079, %v1054, 0
    %vm1083 = vcmask 1043456
    %v1085 = vsel %vm1083, %v1076, 0
    %1087 = vmatprep.subr.bf16.mxu0 0
    %1088 = vmatpush1.bf16.msra.mxu0 0
    %1089 = vmatprep.subr.bf16.mxu0 0
    %1090 = vmatpush1.bf16.msra.mxu0 0
    %1091 = vmatprep.subr.bf16.mxu0 0
    %1092 = vmatpush1.bf16.msra.mxu0 0
    %1093 = vmatprep.subr.bf16.mxu0 0
    %1094 = vmatpush1.bf16.msra.mxu0 0
    %1095 = vmatprep.subr.bf16.mxu0 0
    %1096 = vmatpush1.bf16.msra.mxu0 0
    %1097 = vmatprep.subr.bf16.mxu0 0
    %1098 = vmatpush1.bf16.msra.mxu0 %v1085
    %1099 = vmatprep.subr.bf16.mxu0 0
    %1100 = vmatpush1.bf16.msra.mxu0 %v1075
    %1101 = vmatprep.subr.bf16.mxu0 0
    %1102 = vmatpush1.bf16.msra.mxu0 %v1074
    %1103 = vmatprep.subr.bf16.mxu0 0
    %1104 = vmatpush2.bf16.msra.mxu0 0
    %1105 = vmatprep.subr.bf16.mxu0 0
    %1106 = vmatpush2.bf16.msra.mxu0 0
    %1107 = vmatprep.subr.bf16.mxu0 0
    %1108 = vmatpush2.bf16.msra.mxu0 0
    %1109 = vmatprep.subr.bf16.mxu0 0
    %1110 = vmatpush2.bf16.msra.mxu0 0
    %1111 = vmatprep.subr.bf16.mxu0 0
    %1112 = vmatpush2.bf16.msra.mxu0 0
    %1113 = vmatprep.subr.bf16.mxu0 0
    %1114 = vmatpush2.bf16.msra.mxu0 0
    %1115 = vmatprep.subr.bf16.mxu0 0
    %1116 = vmatpush2.bf16.msra.mxu0 0
    %1117 = vmatprep.subr.bf16.mxu0 0
    %1118 = vmatpush2.bf16.msra.mxu0 0
    %1119 = vmatprep.mubr.bf16.mxu0 0
    %1120 = vmatmul.mubr.bf16.gmra.mxu0 %v1081
    %v1121 = vpop.f32.mrf.mxu0
    %v1122 = vadd.f32 %v1063, %v1121
    %v1123 = vpop.f32.mrf.mxu0
    %v1124 = vpop.f32.mrf.mxu0
    %v1125 = vpop.f32.mrf.mxu0
    %1126 = vdwg.mxu0
    %v1127 = vtanh.pop %v1122
    %v1128 = vmul.f32 %v1127, %v1028
    %1129 = vadd.xlane.f32.xlu0 %v1128
    %v1130 = vpop.xlane.xlu0 %1129
    %v1131 = vmul.f32 %v1130, 0.03125
    %v1132 = vsub.f32 %v1128, %v1131
    %v1133 = vmul.f32 %v1132, %v1028
    %v1134 = vmul.f32 %v1133, %v1133
    %1135 = vadd.xlane.f32.xlu0 %v1134
    %v1136 = vpop.xlane.xlu0 %1135
    %v1137 = vmul.f32 %v1136, 0.03125
    %v1138 = vadd.f32 %v1137, 1e-05
    %v1139 = vrsqrt.pop %v1138
    %v1140 = vmul.f32 %v1133, %v1139
    %v1141 = vlaneseq
    %v1142 = vshrl.u32 %v1141, 7
    %v1143 = vsub.s32 4, %v1142
    %v1144 = vrot.slane %v89, %v1143
    %v1145 = vmul.f32 %v1140, %v1144
    %v1146 = vlaneseq
    %v1147 = vshrl.u32 %v1146, 7
    %v1148 = vsub.s32 5, %v1147
    %v1149 = vrot.slane %v89, %v1148
    %v1150 = vadd.f32 %v1145, %v1149
    %1151 = vst [vmem:[#allocation12] sm:$0xff] %v1150
    // Predicated region
    $region42: #{tpu_custom_call.1} parent=1 // pred_check
      _
    $region43: #{tpu_custom_call.1} parent=1 // pred_check_branch
      %1153 = sbr.rel (0) target = $region45
    $region44: #{tpu_custom_call.1} parent=1 // pred_region
      %s1155 = ssub.s32 128, 128
      %1156 = vsyncadd [#allocation4], %s1155
      %s1158 = sshll.u32 [#allocation11], 4
      %s1159 = int_to_ptr.vmem [resolvable:$true] %s1158
      %1161 = dma.vmem_to_hbm [thread:$0]  %s1159, 128, %s5, [#allocation4]
    $region45: #{tpu_custom_call.1} parent=1 // pred_fallthru
      _
    // Predicated region
    $region46: #{tpu_custom_call.1} parent=1 // pred_check
      _
    $region47: #{tpu_custom_call.1} parent=1 // pred_check_branch
      %1163 = sbr.rel (0) target = $region49
    $region48: #{tpu_custom_call.1} parent=1 // pred_region
      %s1165 = ssub.s32 128, 128
      %1166 = vsyncadd [#allocation13], %s1165
      %s1168 = sshll.u32 [#allocation12], 4
      %s1169 = int_to_ptr.vmem [resolvable:$true] %s1168
      %1171 = dma.vmem_to_hbm [thread:$0]  %s1169, 128, %s6, [#allocation13]
    $region49: #{tpu_custom_call.1} parent=1 // pred_fallthru
      _
    // Predicated region
    $region50: #{tpu_custom_call.1} parent=1 // pred_check
      _
    $region51: #{tpu_custom_call.1} parent=1 // pred_check_branch
      %1173 = sbr.rel (0) target = $region53
    $region52: #{tpu_custom_call.1} parent=1 // pred_region
      %1174 = dma.done [#allocation4], 128
    $region53: #{tpu_custom_call.1} parent=1 // pred_fallthru
      _
    // Predicated region
    $region54: #{tpu_custom_call.1} parent=1 // pred_check
      _
    $region55: #{tpu_custom_call.1} parent=1 // pred_check_branch
      %1176 = sbr.rel (0) target = $region57
    $region56: #{tpu_custom_call.1} parent=1 // pred_region
      %1177 = dma.done [#allocation13], 128
    $region57: #{tpu_custom_call.1} parent=1 // pred_fallthru
      _
    %1178 = vsyncpa [#allocation3], 1
    %1179 = vsyncpa [#allocation6], 1
    %1180 = vsyncpa [#allocation9], 1
    %1181 = vsyncpa [#allocation4], 1
    %1182 = vsyncpa [#allocation13], 1

</llo_original>
